<compile_context>
chip_gen: v7x
topology: tpu7x:2x2x1
jax: 0.10.0
libtpu: 0.0.40
codegen_flags: <defaults>
</compile_context>

<pallas_src>
import functools

import jax
import jax.numpy as jnp
import numpy as np
from jax.experimental import pallas as pl
from jax.experimental.pallas import tpu as pltpu


def _sigmoid(x):
    # single EUP tanh instead of exp + reciprocal
    return 0.5 * (jnp.tanh(0.5 * x) + 1.0)


# -----------------------------------------------------------------------------
# Pallas kernel: fused input projection -> layer-0 LSTM recurrence
#                -> ReLU(h_n[0]) -> Linear
# -----------------------------------------------------------------------------
def lstm_kernel(x_ref,     # (T*Bb, F)  bf16  time-major inputs for this batch block
                wih_ref,   # (F, 4H)    bf16  layer-0 input weights (transposed)
                b0_ref,    # (1, 4H)    f32   b_ih0 + b_hh0
                whh_ref,   # (H, 4H)    bf16  layer-0 recurrent weights (transposed)
                wlin_ref,  # (H, O)     bf16  final linear weight (transposed)
                blin_ref,  # (1, O)     f32   final linear bias
                out_ref,   # (Bb, O)    f32
                xw_ref,    # (T*Bb, 4H) f32   VMEM scratch: all-steps input projection
                *, bf16_gates=False):
    H = whh_ref.shape[0]
    Bb = out_ref.shape[0]
    T = x_ref.shape[0] // Bb
    gate_dt = jnp.bfloat16 if bf16_gates else jnp.float32

    # Fused layer-0 input projection for ALL timesteps: one MXU-efficient GEMM
    # (128 LHS rows) off the per-step serial path; bias folded; stored f32.
    xw_ref[...] = (jnp.dot(x_ref[...], wih_ref[...],
                           preferred_element_type=jnp.float32)
                   + b0_ref[...])

    h = jnp.zeros((Bb, H), jnp.float32)
    c = jnp.zeros((Bb, H), jnp.float32)

    # T is small & static -> fully unrolled Python loop; later steps' loads and
    # weight pushes can issue under earlier steps' EUP/VPU tails.
    for t in range(T):
        g = xw_ref[pl.ds(t * Bb, Bb), :]
        if t > 0:
            # whh_ref indexed per step (NOT hoisted to a value) so the 128 KiB
            # weight tile stays VMEM-resident instead of pinned in vregs.
            g = g + jnp.dot(h.astype(jnp.bfloat16), whh_ref[...],
                            preferred_element_type=jnp.float32)
        i = _sigmoid(g[:, 0 * H:1 * H].astype(gate_dt)).astype(jnp.float32)
        f = _sigmoid(g[:, 1 * H:2 * H].astype(gate_dt)).astype(jnp.float32)
        gg = jnp.tanh(g[:, 2 * H:3 * H].astype(gate_dt)).astype(jnp.float32)
        o = _sigmoid(g[:, 3 * H:4 * H].astype(gate_dt)).astype(jnp.float32)
        c = (f * c + i * gg) if t > 0 else (i * gg)     # c == 0 at t == 0
        h = o * jnp.tanh(c.astype(gate_dt)).astype(jnp.float32)

    hn = jnp.maximum(h, 0.0)                            # ReLU(h_n[0])
    out = (jnp.dot(hn.astype(wlin_ref.dtype), wlin_ref[...],
                   preferred_element_type=jnp.float32)
           + blin_ref[...])
    out_ref[...] = out.astype(out_ref.dtype)


# -----------------------------------------------------------------------------
# One-time parameter preparation (transpose / cast / bias-fold OUT of hot path)
# -----------------------------------------------------------------------------
def prepare_params(params):
    (wih0, whh0, bih0, bhh0,
     _wih1, _whh1, _bih1, _bhh1,   # layer-1 is dead w.r.t. the module output
     wlin, blin) = params
    H = whh0.shape[1]
    O = wlin.shape[0]
    wih0_t = wih0.T.astype(jnp.bfloat16)                    # (F, 4H)
    b0 = (bih0 + bhh0).astype(jnp.float32).reshape(1, 4 * H)
    whh0_t = whh0.T.astype(jnp.bfloat16)                    # (H, 4H)
    wlin_t = wlin.T.astype(jnp.bfloat16)                    # (H, O)
    blin2 = blin.astype(jnp.float32).reshape(1, O)
    return (wih0_t, b0, whh0_t, wlin_t, blin2)


@functools.partial(jax.jit, static_argnames=("num_batch_blocks", "bf16_gates"))
def lstm_forward(x, prepared, num_batch_blocks=1, bf16_gates=False):
    """x: (B, T, F) batch_first like the PyTorch module. Returns (B, output_size)."""
    wih0_t, b0, whh0_t, wlin_t, blin2 = prepared
    B, T, F = x.shape
    H = whh0_t.shape[0]
    G = 4 * H
    O = wlin_t.shape[1]

    # Pad batch so every batch block is a multiple of 8 (sublane-aligned);
    # padded rows are sliced off at the end.
    align = 8 * num_batch_blocks
    Bp = ((B + align - 1) // align) * align
    Bb = Bp // num_batch_blocks

    xt = jnp.transpose(x, (1, 0, 2)).astype(jnp.bfloat16)    # (T, B, F) time-major
    if Bp != B:
        xt = jnp.pad(xt, ((0, 0), (0, Bp - B), (0, 0)))
    # Regroup so each batch block gets a contiguous (T*Bb, F) time-major slab.
    xt = xt.reshape(T, num_batch_blocks, Bb, F).transpose(1, 0, 2, 3)
    xt = xt.reshape(num_batch_blocks, T * Bb, F)

    out_padded = pl.pallas_call(
        functools.partial(lstm_kernel, bf16_gates=bf16_gates),
        out_shape=jax.ShapeDtypeStruct((Bp, O), jnp.float32),
        grid=(num_batch_blocks,),
        in_specs=[
            pl.BlockSpec((None, T * Bb, F), lambda i: (i, 0, 0)),  # x (fused proj in-kernel)
            pl.BlockSpec((F, G), lambda i: (0, 0)),                # wih0^T (replicated)
            pl.BlockSpec((1, G), lambda i: (0, 0)),                # folded layer-0 bias
            pl.BlockSpec((H, G), lambda i: (0, 0)),                # whh0^T (replicated)
            pl.BlockSpec((H, O), lambda i: (0, 0)),                # wlin^T (replicated)
            pl.BlockSpec((1, O), lambda i: (0, 0)),                # blin (replicated)
        ],
        out_specs=pl.BlockSpec((Bb, O), lambda i: (i, 0)),
        scratch_shapes=[pltpu.VMEM((T * Bb, G), jnp.float32)],     # xw scratch (~256 KiB)
        compiler_params=pltpu.CompilerParams(
            dimension_semantics=("parallel",)),
    )(xt, wih0_t, b0, whh0_t, wlin_t, blin2)
    return out_padded[:B]


# -----------------------------------------------------------------------------
# Pure-JAX reference (mirrors torch.nn.LSTM(2 layers) + ReLU + Linear(hn[0]))
# -----------------------------------------------------------------------------
def lstm_reference(x, params):
    (wih0, whh0, bih0, bhh0,
     wih1, whh1, bih1, bhh1,
     wlin, blin) = params
    B, T, F = x.shape
    H = whh0.shape[1]

    def cell(h, c, inp, wih, whh, bih, bhh):
        g = inp @ wih.T + h @ whh.T + bih + bhh
        i, f, gg, o = jnp.split(g, 4, axis=-1)
        i = jax.nn.sigmoid(i)
        f = jax.nn.sigmoid(f)
        gg = jnp.tanh(gg)
        o = jax.nn.sigmoid(o)
        c = f * c + i * gg
        h = o * jnp.tanh(c)
        return h, c

    h0 = jnp.zeros((B, H), jnp.float32)
    c0 = jnp.zeros((B, H), jnp.float32)
    h1 = jnp.zeros((B, H), jnp.float32)
    c1 = jnp.zeros((B, H), jnp.float32)
    for t in range(T):
        h0, c0 = cell(h0, c0, x[:, t, :], wih0, whh0, bih0, bhh0)
        h1, c1 = cell(h1, c1, h0, wih1, whh1, bih1, bhh1)   # top layer (unused by output)
    hn0 = jnp.maximum(h0, 0.0)
    return hn0 @ wlin.T + blin


# -----------------------------------------------------------------------------
# Deterministic parameter init (PyTorch-style uniform(-1/sqrt(H), 1/sqrt(H)))
# -----------------------------------------------------------------------------
def init_params(key, num_features, hidden_size, output_size):
    H = hidden_size
    bound = 1.0 / np.sqrt(H)
    ks = jax.random.split(key, 10)
    u = lambda k, shape: jax.random.uniform(k, shape, jnp.float32, -bound, bound)
    wih0 = u(ks[0], (4 * H, num_features))
    whh0 = u(ks[1], (4 * H, H))
    bih0 = u(ks[2], (4 * H,))
    bhh0 = u(ks[3], (4 * H,))
    wih1 = u(ks[4], (4 * H, H))
    whh1 = u(ks[5], (4 * H, H))
    bih1 = u(ks[6], (4 * H,))
    bhh1 = u(ks[7], (4 * H,))
    wlin = u(ks[8], (output_size, H))
    blin = u(ks[9], (output_size,))
    return (wih0, whh0, bih0, bhh0, wih1, whh1, bih1, bhh1, wlin, blin)


if __name__ == "__main__":
    B, T, F = 16, 8, 8          # batch, seq_len, num_features
    H, O = 128, 4               # hidden_size (lane-aligned), output_size (reshape(B,4) => 4)

    key = jax.random.PRNGKey(0)
    kx, kp = jax.random.split(key)
    x = jax.random.normal(kx, (B, T, F), jnp.float32)
    params = init_params(kp, F, H, O)
    prepared = prepare_params(params)       # one-time transpose / cast / bias-fold

    # num_batch_blocks=1 on v5e/v6e (single TensorCore).  On v7x, re-measure 2
    # before committing: it shards batch across the 2 TensorCores but does NOT
    # shorten the serial T-step chain.  bf16_gates=True is a v6e/v7x-only EUP
    # optimization; kept off here for accuracy and v5e compatibility.
    out = jax.block_until_ready(lstm_forward(x, prepared,
                                             num_batch_blocks=1,
                                             bf16_gates=False))
    ref = jax.block_until_ready(lstm_reference(x, params))

    assert out.shape == (B, 4), out.shape
    # bf16 MXU inputs (f32 accumulation) vs f32 reference -> loose-ish tolerance
    np.testing.assert_allclose(np.asarray(out), np.asarray(ref), rtol=2e-2, atol=2e-2)
    print("KERNEL_OK")
</pallas_src>

<mosaic_0001>
module attributes {stable_mosaic.version = 11 : i64} {
  func.func @lstm_kernel(%arg0: i32, %arg1: memref<1x128x8xbf16, #tpu.memory_space<vmem>>, %arg2: memref<8x512xbf16, #tpu.memory_space<vmem>>, %arg3: memref<1x512xf32, #tpu.memory_space<vmem>>, %arg4: memref<128x512xbf16, #tpu.memory_space<vmem>>, %arg5: memref<128x4xbf16, #tpu.memory_space<vmem>>, %arg6: memref<1x4xf32, #tpu.memory_space<vmem>>, %arg7: memref<16x4xf32, #tpu.memory_space<vmem>>, %arg8: memref<128x512xf32, #tpu.memory_space<vmem>>) attributes {dimension_semantics = [#tpu.dimension_semantics<parallel>], iteration_bounds = array<i64: 1>, scalar_prefetch = 0 : i64, scratch_operands = 1 : i64, tpu.core_type = #tpu.core_type<tc>, window_params = [{transform_indices = @transform_0, window_bounds = array<i64: 1, 128, 8>}, {pipeline_mode = #tpu.pipeline_mode<synchronous>, transform_indices = @transform_1, window_bounds = array<i64: 8, 512>}, {pipeline_mode = #tpu.pipeline_mode<synchronous>, transform_indices = @transform_2, window_bounds = array<i64: 1, 512>}, {pipeline_mode = #tpu.pipeline_mode<synchronous>, transform_indices = @transform_3, window_bounds = array<i64: 128, 512>}, {pipeline_mode = #tpu.pipeline_mode<synchronous>, transform_indices = @transform_4, window_bounds = array<i64: 128, 4>}, {pipeline_mode = #tpu.pipeline_mode<synchronous>, transform_indices = @transform_5, window_bounds = array<i64: 1, 4>}, {transform_indices = @transform_6, window_bounds = array<i64: 16, 4>}]} {
    %c0 = arith.constant 0 : index
    %c0_0 = arith.constant 0 : index
    %c0_1 = arith.constant 0 : index
    %0 = vector.load %arg1[%c0, %c0_0, %c0_1] : memref<1x128x8xbf16, #tpu.memory_space<vmem>>, vector<1x128x8xbf16>
    %1 = vector.shape_cast %0 : vector<1x128x8xbf16> to vector<128x8xbf16>
    %c0_2 = arith.constant 0 : index
    %c0_3 = arith.constant 0 : index
    %2 = vector.load %arg2[%c0_2, %c0_3] : memref<8x512xbf16, #tpu.memory_space<vmem>>, vector<8x512xbf16>
    %cst = arith.constant dense<0.000000e+00> : vector<128x512xf32>
    %3 = tpu.matmul %1, %2, %cst {dimension_numbers = #tpu.dot_dimension_numbers<[1], [0], [0], [1], [0, 0, 1, 1], [], []>} : vector<128x8xbf16>, vector<8x512xbf16>, vector<128x512xf32> -> vector<128x512xf32>
    %c0_4 = arith.constant 0 : index
    %c0_5 = arith.constant 0 : index
    %4 = vector.load %arg3[%c0_4, %c0_5] : memref<1x512xf32, #tpu.memory_space<vmem>>, vector<1x512xf32>
    %5 = vector.broadcast %4 : vector<1x512xf32> to vector<128x512xf32>
    %6 = arith.addf %3, %5 : vector<128x512xf32>
    %c0_6 = arith.constant 0 : index
    %c0_7 = arith.constant 0 : index
    %7 = vector.load %arg8[%c0_6, %c0_7] : memref<128x512xf32, #tpu.memory_space<vmem>>, vector<128x512xf32>
    tpu.vector_store %arg8[%c0_6, %c0_7], %6 {strides = array<i32>} : memref<128x512xf32, #tpu.memory_space<vmem>>, vector<128x512xf32>,
    %c0_8 = arith.constant 0 : index
    %c0_9 = arith.constant 0 : index
    %8 = vector.load %arg8[%c0_8, %c0_9] : memref<128x512xf32, #tpu.memory_space<vmem>>, vector<16x512xf32>
    %9 = vector.extract_strided_slice %8 {offsets = [0, 0], sizes = [16, 128], strides = [1, 1]} : vector<16x512xf32> to vector<16x128xf32>
    %cst_10 = arith.constant 5.000000e-01 : f32
    %10 = vector.broadcast %cst_10 : f32 to vector<16x128xf32>
    %11 = arith.mulf %10, %9 : vector<16x128xf32>
    %12 = math.tanh %11 : vector<16x128xf32>
    %cst_11 = arith.constant 1.000000e+00 : f32
    %13 = vector.broadcast %cst_11 : f32 to vector<16x128xf32>
    %14 = arith.addf %12, %13 : vector<16x128xf32>
    %cst_12 = arith.constant 5.000000e-01 : f32
    %15 = vector.broadcast %cst_12 : f32 to vector<16x128xf32>
    %16 = arith.mulf %15, %14 : vector<16x128xf32>
    %17 = vector.extract_strided_slice %8 {offsets = [0, 256], sizes = [16, 128], strides = [1, 1]} : vector<16x512xf32> to vector<16x128xf32>
    %18 = math.tanh %17 : vector<16x128xf32>
    %19 = vector.extract_strided_slice %8 {offsets = [0, 384], sizes = [16, 128], strides = [1, 1]} : vector<16x512xf32> to vector<16x128xf32>
    %cst_13 = arith.constant 5.000000e-01 : f32
    %20 = vector.broadcast %cst_13 : f32 to vector<16x128xf32>
    %21 = arith.mulf %20, %19 : vector<16x128xf32>
    %22 = math.tanh %21 : vector<16x128xf32>
    %cst_14 = arith.constant 1.000000e+00 : f32
    %23 = vector.broadcast %cst_14 : f32 to vector<16x128xf32>
    %24 = arith.addf %22, %23 : vector<16x128xf32>
    %cst_15 = arith.constant 5.000000e-01 : f32
    %25 = vector.broadcast %cst_15 : f32 to vector<16x128xf32>
    %26 = arith.mulf %25, %24 : vector<16x128xf32>
    %27 = arith.mulf %16, %18 : vector<16x128xf32>
    %28 = math.tanh %27 : vector<16x128xf32>
    %29 = arith.mulf %26, %28 : vector<16x128xf32>
    %c16 = arith.constant 16 : index
    %c0_16 = arith.constant 0 : index
    %30 = vector.load %arg8[%c16, %c0_16] : memref<128x512xf32, #tpu.memory_space<vmem>>, vector<16x512xf32>
    %31 = arith.truncf %29 : vector<16x128xf32> to vector<16x128xbf16>
    %c0_17 = arith.constant 0 : index
    %c0_18 = arith.constant 0 : index
    %32 = vector.load %arg4[%c0_17, %c0_18] : memref<128x512xbf16, #tpu.memory_space<vmem>>, vector<128x512xbf16>
    %cst_19 = arith.constant dense<0.000000e+00> : vector<16x512xf32>
    %33 = tpu.matmul %31, %32, %cst_19 {dimension_numbers = #tpu.dot_dimension_numbers<[1], [0], [0], [1], [0, 0, 1, 1], [], []>} : vector<16x128xbf16>, vector<128x512xbf16>, vector<16x512xf32> -> vector<16x512xf32>
    %34 = arith.addf %30, %33 : vector<16x512xf32>
    %35 = vector.extract_strided_slice %34 {offsets = [0, 0], sizes = [16, 128], strides = [1, 1]} : vector<16x512xf32> to vector<16x128xf32>
    %cst_20 = arith.constant 5.000000e-01 : f32
    %36 = vector.broadcast %cst_20 : f32 to vector<16x128xf32>
    %37 = arith.mulf %36, %35 : vector<16x128xf32>
    %38 = math.tanh %37 : vector<16x128xf32>
    %cst_21 = arith.constant 1.000000e+00 : f32
    %39 = vector.broadcast %cst_21 : f32 to vector<16x128xf32>
    %40 = arith.addf %38, %39 : vector<16x128xf32>
    %cst_22 = arith.constant 5.000000e-01 : f32
    %41 = vector.broadcast %cst_22 : f32 to vector<16x128xf32>
    %42 = arith.mulf %41, %40 : vector<16x128xf32>
    %43 = vector.extract_strided_slice %34 {offsets = [0, 128], sizes = [16, 128], strides = [1, 1]} : vector<16x512xf32> to vector<16x128xf32>
    %cst_23 = arith.constant 5.000000e-01 : f32
    %44 = vector.broadcast %cst_23 : f32 to vector<16x128xf32>
    %45 = arith.mulf %44, %43 : vector<16x128xf32>
    %46 = math.tanh %45 : vector<16x128xf32>
    %cst_24 = arith.constant 1.000000e+00 : f32
    %47 = vector.broadcast %cst_24 : f32 to vector<16x128xf32>
    %48 = arith.addf %46, %47 : vector<16x128xf32>
    %cst_25 = arith.constant 5.000000e-01 : f32
    %49 = vector.broadcast %cst_25 : f32 to vector<16x128xf32>
    %50 = arith.mulf %49, %48 : vector<16x128xf32>
    %51 = vector.extract_strided_slice %34 {offsets = [0, 256], sizes = [16, 128], strides = [1, 1]} : vector<16x512xf32> to vector<16x128xf32>
    %52 = math.tanh %51 : vector<16x128xf32>
    %53 = vector.extract_strided_slice %34 {offsets = [0, 384], sizes = [16, 128], strides = [1, 1]} : vector<16x512xf32> to vector<16x128xf32>
    %cst_26 = arith.constant 5.000000e-01 : f32
    %54 = vector.broadcast %cst_26 : f32 to vector<16x128xf32>
    %55 = arith.mulf %54, %53 : vector<16x128xf32>
    %56 = math.tanh %55 : vector<16x128xf32>
    %cst_27 = arith.constant 1.000000e+00 : f32
    %57 = vector.broadcast %cst_27 : f32 to vector<16x128xf32>
    %58 = arith.addf %56, %57 : vector<16x128xf32>
    %cst_28 = arith.constant 5.000000e-01 : f32
    %59 = vector.broadcast %cst_28 : f32 to vector<16x128xf32>
    %60 = arith.mulf %59, %58 : vector<16x128xf32>
    %61 = arith.mulf %50, %27 : vector<16x128xf32>
    %62 = arith.mulf %42, %52 : vector<16x128xf32>
    %63 = arith.addf %61, %62 : vector<16x128xf32>
    %64 = math.tanh %63 : vector<16x128xf32>
    %65 = arith.mulf %60, %64 : vector<16x128xf32>
    %c32 = arith.constant 32 : index
    %c0_29 = arith.constant 0 : index
    %66 = vector.load %arg8[%c32, %c0_29] : memref<128x512xf32, #tpu.memory_space<vmem>>, vector<16x512xf32>
    %67 = arith.truncf %65 : vector<16x128xf32> to vector<16x128xbf16>
    %c0_30 = arith.constant 0 : index
    %c0_31 = arith.constant 0 : index
    %68 = vector.load %arg4[%c0_30, %c0_31] : memref<128x512xbf16, #tpu.memory_space<vmem>>, vector<128x512xbf16>
    %cst_32 = arith.constant dense<0.000000e+00> : vector<16x512xf32>
    %69 = tpu.matmul %67, %68, %cst_32 {dimension_numbers = #tpu.dot_dimension_numbers<[1], [0], [0], [1], [0, 0, 1, 1], [], []>} : vector<16x128xbf16>, vector<128x512xbf16>, vector<16x512xf32> -> vector<16x512xf32>
    %70 = arith.addf %66, %69 : vector<16x512xf32>
    %71 = vector.extract_strided_slice %70 {offsets = [0, 0], sizes = [16, 128], strides = [1, 1]} : vector<16x512xf32> to vector<16x128xf32>
    %cst_33 = arith.constant 5.000000e-01 : f32
    %72 = vector.broadcast %cst_33 : f32 to vector<16x128xf32>
    %73 = arith.mulf %72, %71 : vector<16x128xf32>
    %74 = math.tanh %73 : vector<16x128xf32>
    %cst_34 = arith.constant 1.000000e+00 : f32
    %75 = vector.broadcast %cst_34 : f32 to vector<16x128xf32>
    %76 = arith.addf %74, %75 : vector<16x128xf32>
    %cst_35 = arith.constant 5.000000e-01 : f32
    %77 = vector.broadcast %cst_35 : f32 to vector<16x128xf32>
    %78 = arith.mulf %77, %76 : vector<16x128xf32>
    %79 = vector.extract_strided_slice %70 {offsets = [0, 128], sizes = [16, 128], strides = [1, 1]} : vector<16x512xf32> to vector<16x128xf32>
    %cst_36 = arith.constant 5.000000e-01 : f32
    %80 = vector.broadcast %cst_36 : f32 to vector<16x128xf32>
    %81 = arith.mulf %80, %79 : vector<16x128xf32>
    %82 = math.tanh %81 : vector<16x128xf32>
    %cst_37 = arith.constant 1.000000e+00 : f32
    %83 = vector.broadcast %cst_37 : f32 to vector<16x128xf32>
    %84 = arith.addf %82, %83 : vector<16x128xf32>
    %cst_38 = arith.constant 5.000000e-01 : f32
    %85 = vector.broadcast %cst_38 : f32 to vector<16x128xf32>
    %86 = arith.mulf %85, %84 : vector<16x128xf32>
    %87 = vector.extract_strided_slice %70 {offsets = [0, 256], sizes = [16, 128], strides = [1, 1]} : vector<16x512xf32> to vector<16x128xf32>
    %88 = math.tanh %87 : vector<16x128xf32>
    %89 = vector.extract_strided_slice %70 {offsets = [0, 384], sizes = [16, 128], strides = [1, 1]} : vector<16x512xf32> to vector<16x128xf32>
    %cst_39 = arith.constant 5.000000e-01 : f32
    %90 = vector.broadcast %cst_39 : f32 to vector<16x128xf32>
    %91 = arith.mulf %90, %89 : vector<16x128xf32>
    %92 = math.tanh %91 : vector<16x128xf32>
    %cst_40 = arith.constant 1.000000e+00 : f32
    %93 = vector.broadcast %cst_40 : f32 to vector<16x128xf32>
    %94 = arith.addf %92, %93 : vector<16x128xf32>
    %cst_41 = arith.constant 5.000000e-01 : f32
    %95 = vector.broadcast %cst_41 : f32 to vector<16x128xf32>
    %96 = arith.mulf %95, %94 : vector<16x128xf32>
    %97 = arith.mulf %86, %63 : vector<16x128xf32>
    %98 = arith.mulf %78, %88 : vector<16x128xf32>
    %99 = arith.addf %97, %98 : vector<16x128xf32>
    %100 = math.tanh %99 : vector<16x128xf32>
    %101 = arith.mulf %96, %100 : vector<16x128xf32>
    %c48 = arith.constant 48 : index
    %c0_42 = arith.constant 0 : index
    %102 = vector.load %arg8[%c48, %c0_42] : memref<128x512xf32, #tpu.memory_space<vmem>>, vector<16x512xf32>
    %103 = arith.truncf %101 : vector<16x128xf32> to vector<16x128xbf16>
    %c0_43 = arith.constant 0 : index
    %c0_44 = arith.constant 0 : index
    %104 = vector.load %arg4[%c0_43, %c0_44] : memref<128x512xbf16, #tpu.memory_space<vmem>>, vector<128x512xbf16>
    %cst_45 = arith.constant dense<0.000000e+00> : vector<16x512xf32>
    %105 = tpu.matmul %103, %104, %cst_45 {dimension_numbers = #tpu.dot_dimension_numbers<[1], [0], [0], [1], [0, 0, 1, 1], [], []>} : vector<16x128xbf16>, vector<128x512xbf16>, vector<16x512xf32> -> vector<16x512xf32>
    %106 = arith.addf %102, %105 : vector<16x512xf32>
    %107 = vector.extract_strided_slice %106 {offsets = [0, 0], sizes = [16, 128], strides = [1, 1]} : vector<16x512xf32> to vector<16x128xf32>
    %cst_46 = arith.constant 5.000000e-01 : f32
    %108 = vector.broadcast %cst_46 : f32 to vector<16x128xf32>
    %109 = arith.mulf %108, %107 : vector<16x128xf32>
    %110 = math.tanh %109 : vector<16x128xf32>
    %cst_47 = arith.constant 1.000000e+00 : f32
    %111 = vector.broadcast %cst_47 : f32 to vector<16x128xf32>
    %112 = arith.addf %110, %111 : vector<16x128xf32>
    %cst_48 = arith.constant 5.000000e-01 : f32
    %113 = vector.broadcast %cst_48 : f32 to vector<16x128xf32>
    %114 = arith.mulf %113, %112 : vector<16x128xf32>
    %115 = vector.extract_strided_slice %106 {offsets = [0, 128], sizes = [16, 128], strides = [1, 1]} : vector<16x512xf32> to vector<16x128xf32>
    %cst_49 = arith.constant 5.000000e-01 : f32
    %116 = vector.broadcast %cst_49 : f32 to vector<16x128xf32>
    %117 = arith.mulf %116, %115 : vector<16x128xf32>
    %118 = math.tanh %117 : vector<16x128xf32>
    %cst_50 = arith.constant 1.000000e+00 : f32
    %119 = vector.broadcast %cst_50 : f32 to vector<16x128xf32>
    %120 = arith.addf %118, %119 : vector<16x128xf32>
    %cst_51 = arith.constant 5.000000e-01 : f32
    %121 = vector.broadcast %cst_51 : f32 to vector<16x128xf32>
    %122 = arith.mulf %121, %120 : vector<16x128xf32>
    %123 = vector.extract_strided_slice %106 {offsets = [0, 256], sizes = [16, 128], strides = [1, 1]} : vector<16x512xf32> to vector<16x128xf32>
    %124 = math.tanh %123 : vector<16x128xf32>
    %125 = vector.extract_strided_slice %106 {offsets = [0, 384], sizes = [16, 128], strides = [1, 1]} : vector<16x512xf32> to vector<16x128xf32>
    %cst_52 = arith.constant 5.000000e-01 : f32
    %126 = vector.broadcast %cst_52 : f32 to vector<16x128xf32>
    %127 = arith.mulf %126, %125 : vector<16x128xf32>
    %128 = math.tanh %127 : vector<16x128xf32>
    %cst_53 = arith.constant 1.000000e+00 : f32
    %129 = vector.broadcast %cst_53 : f32 to vector<16x128xf32>
    %130 = arith.addf %128, %129 : vector<16x128xf32>
    %cst_54 = arith.constant 5.000000e-01 : f32
    %131 = vector.broadcast %cst_54 : f32 to vector<16x128xf32>
    %132 = arith.mulf %131, %130 : vector<16x128xf32>
    %133 = arith.mulf %122, %99 : vector<16x128xf32>
    %134 = arith.mulf %114, %124 : vector<16x128xf32>
    %135 = arith.addf %133, %134 : vector<16x128xf32>
    %136 = math.tanh %135 : vector<16x128xf32>
    %137 = arith.mulf %132, %136 : vector<16x128xf32>
    %c64 = arith.constant 64 : index
    %c0_55 = arith.constant 0 : index
    %138 = vector.load %arg8[%c64, %c0_55] : memref<128x512xf32, #tpu.memory_space<vmem>>, vector<16x512xf32>
    %139 = arith.truncf %137 : vector<16x128xf32> to vector<16x128xbf16>
    %c0_56 = arith.constant 0 : index
    %c0_57 = arith.constant 0 : index
    %140 = vector.load %arg4[%c0_56, %c0_57] : memref<128x512xbf16, #tpu.memory_space<vmem>>, vector<128x512xbf16>
    %cst_58 = arith.constant dense<0.000000e+00> : vector<16x512xf32>
    %141 = tpu.matmul %139, %140, %cst_58 {dimension_numbers = #tpu.dot_dimension_numbers<[1], [0], [0], [1], [0, 0, 1, 1], [], []>} : vector<16x128xbf16>, vector<128x512xbf16>, vector<16x512xf32> -> vector<16x512xf32>
    %142 = arith.addf %138, %141 : vector<16x512xf32>
    %143 = vector.extract_strided_slice %142 {offsets = [0, 0], sizes = [16, 128], strides = [1, 1]} : vector<16x512xf32> to vector<16x128xf32>
    %cst_59 = arith.constant 5.000000e-01 : f32
    %144 = vector.broadcast %cst_59 : f32 to vector<16x128xf32>
    %145 = arith.mulf %144, %143 : vector<16x128xf32>
    %146 = math.tanh %145 : vector<16x128xf32>
    %cst_60 = arith.constant 1.000000e+00 : f32
    %147 = vector.broadcast %cst_60 : f32 to vector<16x128xf32>
    %148 = arith.addf %146, %147 : vector<16x128xf32>
    %cst_61 = arith.constant 5.000000e-01 : f32
    %149 = vector.broadcast %cst_61 : f32 to vector<16x128xf32>
    %150 = arith.mulf %149, %148 : vector<16x128xf32>
    %151 = vector.extract_strided_slice %142 {offsets = [0, 128], sizes = [16, 128], strides = [1, 1]} : vector<16x512xf32> to vector<16x128xf32>
    %cst_62 = arith.constant 5.000000e-01 : f32
    %152 = vector.broadcast %cst_62 : f32 to vector<16x128xf32>
    %153 = arith.mulf %152, %151 : vector<16x128xf32>
    %154 = math.tanh %153 : vector<16x128xf32>
    %cst_63 = arith.constant 1.000000e+00 : f32
    %155 = vector.broadcast %cst_63 : f32 to vector<16x128xf32>
    %156 = arith.addf %154, %155 : vector<16x128xf32>
    %cst_64 = arith.constant 5.000000e-01 : f32
    %157 = vector.broadcast %cst_64 : f32 to vector<16x128xf32>
    %158 = arith.mulf %157, %156 : vector<16x128xf32>
    %159 = vector.extract_strided_slice %142 {offsets = [0, 256], sizes = [16, 128], strides = [1, 1]} : vector<16x512xf32> to vector<16x128xf32>
    %160 = math.tanh %159 : vector<16x128xf32>
    %161 = vector.extract_strided_slice %142 {offsets = [0, 384], sizes = [16, 128], strides = [1, 1]} : vector<16x512xf32> to vector<16x128xf32>
    %cst_65 = arith.constant 5.000000e-01 : f32
    %162 = vector.broadcast %cst_65 : f32 to vector<16x128xf32>
    %163 = arith.mulf %162, %161 : vector<16x128xf32>
    %164 = math.tanh %163 : vector<16x128xf32>
    %cst_66 = arith.constant 1.000000e+00 : f32
    %165 = vector.broadcast %cst_66 : f32 to vector<16x128xf32>
    %166 = arith.addf %164, %165 : vector<16x128xf32>
    %cst_67 = arith.constant 5.000000e-01 : f32
    %167 = vector.broadcast %cst_67 : f32 to vector<16x128xf32>
    %168 = arith.mulf %167, %166 : vector<16x128xf32>
    %169 = arith.mulf %158, %135 : vector<16x128xf32>
    %170 = arith.mulf %150, %160 : vector<16x128xf32>
    %171 = arith.addf %169, %170 : vector<16x128xf32>
    %172 = math.tanh %171 : vector<16x128xf32>
    %173 = arith.mulf %168, %172 : vector<16x128xf32>
    %c80 = arith.constant 80 : index
    %c0_68 = arith.constant 0 : index
    %174 = vector.load %arg8[%c80, %c0_68] : memref<128x512xf32, #tpu.memory_space<vmem>>, vector<16x512xf32>
    %175 = arith.truncf %173 : vector<16x128xf32> to vector<16x128xbf16>
    %c0_69 = arith.constant 0 : index
    %c0_70 = arith.constant 0 : index
    %176 = vector.load %arg4[%c0_69, %c0_70] : memref<128x512xbf16, #tpu.memory_space<vmem>>, vector<128x512xbf16>
    %cst_71 = arith.constant dense<0.000000e+00> : vector<16x512xf32>
    %177 = tpu.matmul %175, %176, %cst_71 {dimension_numbers = #tpu.dot_dimension_numbers<[1], [0], [0], [1], [0, 0, 1, 1], [], []>} : vector<16x128xbf16>, vector<128x512xbf16>, vector<16x512xf32> -> vector<16x512xf32>
    %178 = arith.addf %174, %177 : vector<16x512xf32>
    %179 = vector.extract_strided_slice %178 {offsets = [0, 0], sizes = [16, 128], strides = [1, 1]} : vector<16x512xf32> to vector<16x128xf32>
    %cst_72 = arith.constant 5.000000e-01 : f32
    %180 = vector.broadcast %cst_72 : f32 to vector<16x128xf32>
    %181 = arith.mulf %180, %179 : vector<16x128xf32>
    %182 = math.tanh %181 : vector<16x128xf32>
    %cst_73 = arith.constant 1.000000e+00 : f32
    %183 = vector.broadcast %cst_73 : f32 to vector<16x128xf32>
    %184 = arith.addf %182, %183 : vector<16x128xf32>
    %cst_74 = arith.constant 5.000000e-01 : f32
    %185 = vector.broadcast %cst_74 : f32 to vector<16x128xf32>
    %186 = arith.mulf %185, %184 : vector<16x128xf32>
    %187 = vector.extract_strided_slice %178 {offsets = [0, 128], sizes = [16, 128], strides = [1, 1]} : vector<16x512xf32> to vector<16x128xf32>
    %cst_75 = arith.constant 5.000000e-01 : f32
    %188 = vector.broadcast %cst_75 : f32 to vector<16x128xf32>
    %189 = arith.mulf %188, %187 : vector<16x128xf32>
    %190 = math.tanh %189 : vector<16x128xf32>
    %cst_76 = arith.constant 1.000000e+00 : f32
    %191 = vector.broadcast %cst_76 : f32 to vector<16x128xf32>
    %192 = arith.addf %190, %191 : vector<16x128xf32>
    %cst_77 = arith.constant 5.000000e-01 : f32
    %193 = vector.broadcast %cst_77 : f32 to vector<16x128xf32>
    %194 = arith.mulf %193, %192 : vector<16x128xf32>
    %195 = vector.extract_strided_slice %178 {offsets = [0, 256], sizes = [16, 128], strides = [1, 1]} : vector<16x512xf32> to vector<16x128xf32>
    %196 = math.tanh %195 : vector<16x128xf32>
    %197 = vector.extract_strided_slice %178 {offsets = [0, 384], sizes = [16, 128], strides = [1, 1]} : vector<16x512xf32> to vector<16x128xf32>
    %cst_78 = arith.constant 5.000000e-01 : f32
    %198 = vector.broadcast %cst_78 : f32 to vector<16x128xf32>
    %199 = arith.mulf %198, %197 : vector<16x128xf32>
    %200 = math.tanh %199 : vector<16x128xf32>
    %cst_79 = arith.constant 1.000000e+00 : f32
    %201 = vector.broadcast %cst_79 : f32 to vector<16x128xf32>
    %202 = arith.addf %200, %201 : vector<16x128xf32>
    %cst_80 = arith.constant 5.000000e-01 : f32
    %203 = vector.broadcast %cst_80 : f32 to vector<16x128xf32>
    %204 = arith.mulf %203, %202 : vector<16x128xf32>
    %205 = arith.mulf %194, %171 : vector<16x128xf32>
    %206 = arith.mulf %186, %196 : vector<16x128xf32>
    %207 = arith.addf %205, %206 : vector<16x128xf32>
    %208 = math.tanh %207 : vector<16x128xf32>
    %209 = arith.mulf %204, %208 : vector<16x128xf32>
    %c96 = arith.constant 96 : index
    %c0_81 = arith.constant 0 : index
    %210 = vector.load %arg8[%c96, %c0_81] : memref<128x512xf32, #tpu.memory_space<vmem>>, vector<16x512xf32>
    %211 = arith.truncf %209 : vector<16x128xf32> to vector<16x128xbf16>
    %c0_82 = arith.constant 0 : index
    %c0_83 = arith.constant 0 : index
    %212 = vector.load %arg4[%c0_82, %c0_83] : memref<128x512xbf16, #tpu.memory_space<vmem>>, vector<128x512xbf16>
    %cst_84 = arith.constant dense<0.000000e+00> : vector<16x512xf32>
    %213 = tpu.matmul %211, %212, %cst_84 {dimension_numbers = #tpu.dot_dimension_numbers<[1], [0], [0], [1], [0, 0, 1, 1], [], []>} : vector<16x128xbf16>, vector<128x512xbf16>, vector<16x512xf32> -> vector<16x512xf32>
    %214 = arith.addf %210, %213 : vector<16x512xf32>
    %215 = vector.extract_strided_slice %214 {offsets = [0, 0], sizes = [16, 128], strides = [1, 1]} : vector<16x512xf32> to vector<16x128xf32>
    %cst_85 = arith.constant 5.000000e-01 : f32
    %216 = vector.broadcast %cst_85 : f32 to vector<16x128xf32>
    %217 = arith.mulf %216, %215 : vector<16x128xf32>
    %218 = math.tanh %217 : vector<16x128xf32>
    %cst_86 = arith.constant 1.000000e+00 : f32
    %219 = vector.broadcast %cst_86 : f32 to vector<16x128xf32>
    %220 = arith.addf %218, %219 : vector<16x128xf32>
    %cst_87 = arith.constant 5.000000e-01 : f32
    %221 = vector.broadcast %cst_87 : f32 to vector<16x128xf32>
    %222 = arith.mulf %221, %220 : vector<16x128xf32>
    %223 = vector.extract_strided_slice %214 {offsets = [0, 128], sizes = [16, 128], strides = [1, 1]} : vector<16x512xf32> to vector<16x128xf32>
    %cst_88 = arith.constant 5.000000e-01 : f32
    %224 = vector.broadcast %cst_88 : f32 to vector<16x128xf32>
    %225 = arith.mulf %224, %223 : vector<16x128xf32>
    %226 = math.tanh %225 : vector<16x128xf32>
    %cst_89 = arith.constant 1.000000e+00 : f32
    %227 = vector.broadcast %cst_89 : f32 to vector<16x128xf32>
    %228 = arith.addf %226, %227 : vector<16x128xf32>
    %cst_90 = arith.constant 5.000000e-01 : f32
    %229 = vector.broadcast %cst_90 : f32 to vector<16x128xf32>
    %230 = arith.mulf %229, %228 : vector<16x128xf32>
    %231 = vector.extract_strided_slice %214 {offsets = [0, 256], sizes = [16, 128], strides = [1, 1]} : vector<16x512xf32> to vector<16x128xf32>
    %232 = math.tanh %231 : vector<16x128xf32>
    %233 = vector.extract_strided_slice %214 {offsets = [0, 384], sizes = [16, 128], strides = [1, 1]} : vector<16x512xf32> to vector<16x128xf32>
    %cst_91 = arith.constant 5.000000e-01 : f32
    %234 = vector.broadcast %cst_91 : f32 to vector<16x128xf32>
    %235 = arith.mulf %234, %233 : vector<16x128xf32>
    %236 = math.tanh %235 : vector<16x128xf32>
    %cst_92 = arith.constant 1.000000e+00 : f32
    %237 = vector.broadcast %cst_92 : f32 to vector<16x128xf32>
    %238 = arith.addf %236, %237 : vector<16x128xf32>
    %cst_93 = arith.constant 5.000000e-01 : f32
    %239 = vector.broadcast %cst_93 : f32 to vector<16x128xf32>
    %240 = arith.mulf %239, %238 : vector<16x128xf32>
    %241 = arith.mulf %230, %207 : vector<16x128xf32>
    %242 = arith.mulf %222, %232 : vector<16x128xf32>
    %243 = arith.addf %241, %242 : vector<16x128xf32>
    %244 = math.tanh %243 : vector<16x128xf32>
    %245 = arith.mulf %240, %244 : vector<16x128xf32>
    %c112 = arith.constant 112 : index
    %c0_94 = arith.constant 0 : index
    %246 = vector.load %arg8[%c112, %c0_94] : memref<128x512xf32, #tpu.memory_space<vmem>>, vector<16x512xf32>
    %247 = arith.truncf %245 : vector<16x128xf32> to vector<16x128xbf16>
    %c0_95 = arith.constant 0 : index
    %c0_96 = arith.constant 0 : index
    %248 = vector.load %arg4[%c0_95, %c0_96] : memref<128x512xbf16, #tpu.memory_space<vmem>>, vector<128x512xbf16>
    %cst_97 = arith.constant dense<0.000000e+00> : vector<16x512xf32>
    %249 = tpu.matmul %247, %248, %cst_97 {dimension_numbers = #tpu.dot_dimension_numbers<[1], [0], [0], [1], [0, 0, 1, 1], [], []>} : vector<16x128xbf16>, vector<128x512xbf16>, vector<16x512xf32> -> vector<16x512xf32>
    %250 = arith.addf %246, %249 : vector<16x512xf32>
    %251 = vector.extract_strided_slice %250 {offsets = [0, 0], sizes = [16, 128], strides = [1, 1]} : vector<16x512xf32> to vector<16x128xf32>
    %cst_98 = arith.constant 5.000000e-01 : f32
    %252 = vector.broadcast %cst_98 : f32 to vector<16x128xf32>
    %253 = arith.mulf %252, %251 : vector<16x128xf32>
    %254 = math.tanh %253 : vector<16x128xf32>
    %cst_99 = arith.constant 1.000000e+00 : f32
    %255 = vector.broadcast %cst_99 : f32 to vector<16x128xf32>
    %256 = arith.addf %254, %255 : vector<16x128xf32>
    %cst_100 = arith.constant 5.000000e-01 : f32
    %257 = vector.broadcast %cst_100 : f32 to vector<16x128xf32>
    %258 = arith.mulf %257, %256 : vector<16x128xf32>
    %259 = vector.extract_strided_slice %250 {offsets = [0, 128], sizes = [16, 128], strides = [1, 1]} : vector<16x512xf32> to vector<16x128xf32>
    %cst_101 = arith.constant 5.000000e-01 : f32
    %260 = vector.broadcast %cst_101 : f32 to vector<16x128xf32>
    %261 = arith.mulf %260, %259 : vector<16x128xf32>
    %262 = math.tanh %261 : vector<16x128xf32>
    %cst_102 = arith.constant 1.000000e+00 : f32
    %263 = vector.broadcast %cst_102 : f32 to vector<16x128xf32>
    %264 = arith.addf %262, %263 : vector<16x128xf32>
    %cst_103 = arith.constant 5.000000e-01 : f32
    %265 = vector.broadcast %cst_103 : f32 to vector<16x128xf32>
    %266 = arith.mulf %265, %264 : vector<16x128xf32>
    %267 = vector.extract_strided_slice %250 {offsets = [0, 256], sizes = [16, 128], strides = [1, 1]} : vector<16x512xf32> to vector<16x128xf32>
    %268 = math.tanh %267 : vector<16x128xf32>
    %269 = vector.extract_strided_slice %250 {offsets = [0, 384], sizes = [16, 128], strides = [1, 1]} : vector<16x512xf32> to vector<16x128xf32>
    %cst_104 = arith.constant 5.000000e-01 : f32
    %270 = vector.broadcast %cst_104 : f32 to vector<16x128xf32>
    %271 = arith.mulf %270, %269 : vector<16x128xf32>
    %272 = math.tanh %271 : vector<16x128xf32>
    %cst_105 = arith.constant 1.000000e+00 : f32
    %273 = vector.broadcast %cst_105 : f32 to vector<16x128xf32>
    %274 = arith.addf %272, %273 : vector<16x128xf32>
    %cst_106 = arith.constant 5.000000e-01 : f32
    %275 = vector.broadcast %cst_106 : f32 to vector<16x128xf32>
    %276 = arith.mulf %275, %274 : vector<16x128xf32>
    %277 = arith.mulf %266, %243 : vector<16x128xf32>
    %278 = arith.mulf %258, %268 : vector<16x128xf32>
    %279 = arith.addf %277, %278 : vector<16x128xf32>
    %280 = math.tanh %279 : vector<16x128xf32>
    %281 = arith.mulf %276, %280 : vector<16x128xf32>
    %cst_107 = arith.constant 0.000000e+00 : f32
    %282 = vector.broadcast %cst_107 : f32 to vector<16x128xf32>
    %283 = arith.maximumf %281, %282 : vector<16x128xf32>
    %284 = arith.truncf %283 : vector<16x128xf32> to vector<16x128xbf16>
    %c0_108 = arith.constant 0 : index
    %c0_109 = arith.constant 0 : index
    %285 = vector.load %arg5[%c0_108, %c0_109] : memref<128x4xbf16, #tpu.memory_space<vmem>>, vector<128x4xbf16>
    %cst_110 = arith.constant dense<0.000000e+00> : vector<16x4xf32>
    %286 = tpu.matmul %284, %285, %cst_110 {dimension_numbers = #tpu.dot_dimension_numbers<[1], [0], [0], [1], [0, 0, 1, 1], [], []>} : vector<16x128xbf16>, vector<128x4xbf16>, vector<16x4xf32> -> vector<16x4xf32>
    %c0_111 = arith.constant 0 : index
    %c0_112 = arith.constant 0 : index
    %287 = vector.load %arg6[%c0_111, %c0_112] : memref<1x4xf32, #tpu.memory_space<vmem>>, vector<1x4xf32>
    %288 = vector.broadcast %287 : vector<1x4xf32> to vector<16x4xf32>
    %289 = arith.addf %286, %288 : vector<16x4xf32>
    %c0_113 = arith.constant 0 : index
    %c0_114 = arith.constant 0 : index
    %290 = vector.load %arg7[%c0_113, %c0_114] : memref<16x4xf32, #tpu.memory_space<vmem>>, vector<16x4xf32>
    tpu.vector_store %arg7[%c0_113, %c0_114], %289 {strides = array<i32>} : memref<16x4xf32, #tpu.memory_space<vmem>>, vector<16x4xf32>,
    return
  }
  func.func @transform_0(%arg0: i32) -> (i32, i32, i32) {
    %c0_i32 = arith.constant 0 : i32
    %c0_i32_0 = arith.constant 0 : i32
    %c0_i32_1 = arith.constant 0 : i32
    return %arg0, %c0_i32, %c0_i32_0 : i32, i32, i32
  }
  func.func @transform_1(%arg0: i32) -> (i32, i32) {
    %c0_i32 = arith.constant 0 : i32
    %c0_i32_0 = arith.constant 0 : i32
    %c0_i32_1 = arith.constant 0 : i32
    return %c0_i32, %c0_i32_0 : i32, i32
  }
  func.func @transform_2(%arg0: i32) -> (i32, i32) {
    %c0_i32 = arith.constant 0 : i32
    %c0_i32_0 = arith.constant 0 : i32
    %c0_i32_1 = arith.constant 0 : i32
    return %c0_i32, %c0_i32_0 : i32, i32
  }
  func.func @transform_3(%arg0: i32) -> (i32, i32) {
    %c0_i32 = arith.constant 0 : i32
    %c0_i32_0 = arith.constant 0 : i32
    %c0_i32_1 = arith.constant 0 : i32
    return %c0_i32, %c0_i32_0 : i32, i32
  }
  func.func @transform_4(%arg0: i32) -> (i32, i32) {
    %c0_i32 = arith.constant 0 : i32
    %c0_i32_0 = arith.constant 0 : i32
    %c0_i32_1 = arith.constant 0 : i32
    return %c0_i32, %c0_i32_0 : i32, i32
  }
  func.func @transform_5(%arg0: i32) -> (i32, i32) {
    %c0_i32 = arith.constant 0 : i32
    %c0_i32_0 = arith.constant 0 : i32
    %c0_i32_1 = arith.constant 0 : i32
    return %c0_i32, %c0_i32_0 : i32, i32
  }
  func.func @transform_6(%arg0: i32) -> (i32, i32) {
    %c0_i32 = arith.constant 0 : i32
    %c0_i32_0 = arith.constant 0 : i32
    return %arg0, %c0_i32 : i32, i32
  }
}

</mosaic_0001>

<llo_original>
// kernel: lstm_forward.1
$region0: #{lstm_forward.1}
  #allocation0 [shape = 'u32[]', space=smem, size = 0x4, offset = 0x4, fixed_abs, tag = 'smem constant byte address 0x4 - core index']
  #allocation1 [shape = 'u32[144,128]{1,0:T(1,128)}', space=vmem, size = 0x12000, scoped, tag = 'internal scratch']
  #allocation2 [shape = 'f32[128,512]{1,0:T(8,128)}', space=vmem, size = 0x40000, scoped, tag = 'scratch operand']
  %s0 = inlined_call_operand.vmem [shape: bf16[1,128,8], index: 0, kind: input, shape index: {}]
  %s1 = inlined_call_operand.vmem [shape: bf16[8,512], index: 1, kind: input, shape index: {}]
  %s2 = inlined_call_operand.hbm [shape: f32[1,512], index: 2, kind: input, shape index: {}]
  %s3 = inlined_call_operand.vmem [shape: bf16[128,512], index: 3, kind: input, shape index: {}]
  %s4 = inlined_call_operand.vmem [shape: bf16[128,4], index: 4, kind: input, shape index: {}]
  %s5 = inlined_call_operand.vmem [shape: f32[1,4], index: 5, kind: input, shape index: {}]
  %s6 = inlined_call_operand.vmem [shape: f32[16,4], index: 6, kind: output, shape index: {}]
  %s7 = sld [smem:[#allocation0]]
  $region38: #{lstm_forward.1} parent=0
    _
  %s9 = ssub.s32 1, %s7
  %s10 = scalar_select 0, %s9, %s7
  $region1: #{lstm_forward.1} parent=0
    #allocation3 [shape = 'u8[2048]{0}', space=vmem, size = 0x800, scoped, tag = 'input window, operand 2, single buffered']
    #allocation4 [shape = 's32[1]{0}', space=sflag, size = 0x4, scoped, tag = 'scoped memory for lstm_forward.1']
    %11 = vsyncpa [#allocation4], 0
    // Predicated region
    $region2: #{lstm_forward.1} parent=1 // pred_check
      _
    $region3: #{lstm_forward.1} parent=1 // pred_check_branch
      %13 = sbr.rel (0) target = $region5
    $region4: #{lstm_forward.1} parent=1 // pred_region
      _
    $region5: #{lstm_forward.1} parent=1 // pred_fallthru
      _
    // Predicated region
    $region6: #{lstm_forward.1} parent=1 // pred_check
      _
    $region7: #{lstm_forward.1} parent=1 // pred_check_branch
      %15 = sbr.rel (0) target = $region9
    $region8: #{lstm_forward.1} parent=1 // pred_region
      _
    $region9: #{lstm_forward.1} parent=1 // pred_fallthru
      _
    // Predicated region
    $region10: #{lstm_forward.1} parent=1 // pred_check
      _
    $region11: #{lstm_forward.1} parent=1 // pred_check_branch
      %17 = sbr.rel (0) target = $region13
    $region12: #{lstm_forward.1} parent=1 // pred_region
      %s19 = ssub.s32 64, 64
      %20 = vsyncadd [#allocation4], %s19
      %s22 = sshll.u32 [#allocation3], 4
      %s23 = int_to_ptr.vmem [resolvable:$true] %s22
      %25 = dma.hbm_to_vmem [thread:$0]  %s2, 64, %s23, [#allocation4]
    $region13: #{lstm_forward.1} parent=1 // pred_fallthru
      _
    // Predicated region
    $region14: #{lstm_forward.1} parent=1 // pred_check
      _
    $region15: #{lstm_forward.1} parent=1 // pred_check_branch
      %27 = sbr.rel (0) target = $region17
    $region16: #{lstm_forward.1} parent=1 // pred_region
      _
    $region17: #{lstm_forward.1} parent=1 // pred_fallthru
      _
    // Predicated region
    $region18: #{lstm_forward.1} parent=1 // pred_check
      _
    $region19: #{lstm_forward.1} parent=1 // pred_check_branch
      %29 = sbr.rel (0) target = $region21
    $region20: #{lstm_forward.1} parent=1 // pred_region
      _
    $region21: #{lstm_forward.1} parent=1 // pred_fallthru
      _
    // Predicated region
    $region22: #{lstm_forward.1} parent=1 // pred_check
      _
    $region23: #{lstm_forward.1} parent=1 // pred_check_branch
      %31 = sbr.rel (0) target = $region25
    $region24: #{lstm_forward.1} parent=1 // pred_region
      _
    $region25: #{lstm_forward.1} parent=1 // pred_fallthru
      _
    // Predicated region
    $region26: #{lstm_forward.1} parent=1 // pred_check
      _
    $region27: #{lstm_forward.1} parent=1 // pred_check_branch
      %33 = sbr.rel (0) target = $region29
    $region28: #{lstm_forward.1} parent=1 // pred_region
      %34 = dma.done [#allocation4], 64
    $region29: #{lstm_forward.1} parent=1 // pred_fallthru
      _
    %v36 = vld [vmem:[%s0] sm:$0xf]
    %v37 = vld [vmem:[%s0 + $0x4] sm:$0xf]
    %v38 = vld [vmem:[%s0 + $0x8] sm:$0xf]
    %v39 = vld [vmem:[%s0 + $0xc] sm:$0xf]
    %v40 = vld [vmem:[%s0 + $0x10] sm:$0xf]
    %v41 = vld [vmem:[%s0 + $0x14] sm:$0xf]
    %v42 = vld [vmem:[%s0 + $0x18] sm:$0xf]
    %v43 = vld [vmem:[%s0 + $0x1c] sm:$0xf]
    %v44 = vld [vmem:[%s0 + $0x20] sm:$0xf]
    %v45 = vld [vmem:[%s0 + $0x24] sm:$0xf]
    %v46 = vld [vmem:[%s0 + $0x28] sm:$0xf]
    %v47 = vld [vmem:[%s0 + $0x2c] sm:$0xf]
    %v48 = vld [vmem:[%s0 + $0x30] sm:$0xf]
    %v49 = vld [vmem:[%s0 + $0x34] sm:$0xf]
    %v50 = vld [vmem:[%s0 + $0x38] sm:$0xf]
    %v51 = vld [vmem:[%s0 + $0x3c] sm:$0xf]
    %v52 = vld [vmem:[%s1] sm:$0xff]
    %v53 = vld [vmem:[%s1 + $0x8] sm:$0xff]
    %v54 = vld [vmem:[#allocation3] sm:$0xf]
    %v56 = vlaneseq
    %v57 = vshrl.u32 %v56, 7
    %v58 = vsub.s32 0, %v57
    %v59 = vrot.slane %v54, %v58
    %v60 = vlaneseq
    %v61 = vshrl.u32 %v60, 7
    %v62 = vsub.s32 1, %v61
    %v63 = vrot.slane %v54, %v62
    %v64 = vlaneseq
    %v65 = vshrl.u32 %v64, 7
    %v66 = vsub.s32 2, %v65
    %v67 = vrot.slane %v54, %v66
    %v68 = vlaneseq
    %v69 = vshrl.u32 %v68, 7
    %v70 = vsub.s32 3, %v69
    %v71 = vrot.slane %v54, %v70
    %v92 = vunpack.c.l.b16 %v36
    %v93 = vunpack.c.l.b16 %v37
    %v94 = vunpack.c.l.b16 %v38
    %v95 = vunpack.c.l.b16 %v39
    %v96 = vunpack.c.l.b16 %v40
    %v97 = vunpack.c.l.b16 %v41
    %v98 = vunpack.c.l.b16 %v42
    %v99 = vunpack.c.l.b16 %v43
    %v100 = vunpack.c.l.b16 %v44
    %v101 = vunpack.c.l.b16 %v45
    %v102 = vunpack.c.l.b16 %v46
    %v103 = vunpack.c.l.b16 %v47
    %v104 = vunpack.c.l.b16 %v48
    %v105 = vunpack.c.l.b16 %v49
    %v106 = vunpack.c.l.b16 %v50
    %v107 = vunpack.c.l.b16 %v51
    %v108 = vpack.c.b16 %v93, %v92
    %v109 = vpack.c.b16 %v95, %v94
    %v110 = vpack.c.b16 %v97, %v96
    %v111 = vpack.c.b16 %v99, %v98
    %v112 = vpack.c.b16 %v101, %v100
    %v113 = vpack.c.b16 %v103, %v102
    %v114 = vpack.c.b16 %v105, %v104
    %v115 = vpack.c.b16 %v107, %v106
    %v118 = vunpack.c.l.b16 %v52
    %v119 = vunpack.c.h.b16 %v52
    %v120 = vunpack.c.l.b16 %v53
    %v121 = vunpack.c.h.b16 %v53
    %v122 = vpack.c.b16 %v118, %v118
    %v123 = vpack.c.b16 %v119, %v119
    %v124 = vpack.c.b16 %v120, %v120
    %v125 = vpack.c.b16 %v121, %v121
    %vm126 = vcmask 64512
    %v128 = vsel %vm126, %v108, 0
    %v131 = vsel %vm126, %v109, 0
    %v134 = vsel %vm126, %v110, 0
    %v137 = vsel %vm126, %v111, 0
    %v140 = vsel %vm126, %v112, 0
    %v143 = vsel %vm126, %v113, 0
    %v146 = vsel %vm126, %v114, 0
    %v149 = vsel %vm126, %v115, 0
    %vm151 = vcmask 1043456
    %v153 = vsel %vm151, %v122, 0
    %v156 = vsel %vm151, %v123, 0
    %v159 = vsel %vm151, %v124, 0
    %v162 = vsel %vm151, %v125, 0
    %164 = vmatprep.subr.bf16.mxu0 %v156
    %165 = vmatpush1.bf16.msra.mxu0 %v153
    %166 = vmatprep.subr.bf16.mxu0 0
    %167 = vmatpush1.bf16.msra.mxu0 0
    %168 = vmatprep.subr.bf16.mxu0 0
    %169 = vmatpush1.bf16.msra.mxu0 0
    %170 = vmatprep.subr.bf16.mxu0 0
    %171 = vmatpush1.bf16.msra.mxu0 0
    %172 = vmatprep.subr.bf16.mxu0 0
    %173 = vmatpush1.bf16.msra.mxu0 0
    %174 = vmatprep.subr.bf16.mxu0 0
    %175 = vmatpush1.bf16.msra.mxu0 0
    %176 = vmatprep.subr.bf16.mxu0 0
    %177 = vmatpush1.bf16.msra.mxu0 0
    %178 = vmatprep.subr.bf16.mxu0 0
    %179 = vmatpush1.bf16.msra.mxu0 0
    %180 = vmatprep.subr.bf16.mxu0 0
    %181 = vmatpush1.bf16.msra.mxu0 0
    %182 = vmatprep.subr.bf16.mxu0 0
    %183 = vmatpush1.bf16.msra.mxu0 0
    %184 = vmatprep.subr.bf16.mxu0 0
    %185 = vmatpush1.bf16.msra.mxu0 0
    %186 = vmatprep.subr.bf16.mxu0 0
    %187 = vmatpush1.bf16.msra.mxu0 0
    %188 = vmatprep.subr.bf16.mxu0 0
    %189 = vmatpush1.bf16.msra.mxu0 0
    %190 = vmatprep.subr.bf16.mxu0 0
    %191 = vmatpush1.bf16.msra.mxu0 0
    %192 = vmatprep.subr.bf16.mxu0 0
    %193 = vmatpush1.bf16.msra.mxu0 0
    %194 = vmatprep.subr.bf16.mxu0 0
    %195 = vmatpush1.bf16.msra.mxu0 0
    %196 = vmatprep.mubr.bf16.mxu0 0
    %197 = vmatmul.mubr.bf16.gmra.mrb[0].mxu0 %v128
    %v198 = vpop.f32.mrb[0].mxu0
    %v199 = vadd.f32 %v59, %v198
    %v200 = vpop.f32.mrb[0].mxu0
    %v201 = vadd.f32 %v63, %v200
    %v202 = vpop.f32.mrb[0].mxu0
    %v203 = vadd.f32 %v59, %v202
    %v204 = vpop.f32.mrb[0].mxu0
    %v205 = vadd.f32 %v63, %v204
    %206 = vmatprep.mubr.bf16.mxu0 0
    %207 = vmatmul.mubr.bf16.gmra.mrb[0].mxu0 %v131
    %v208 = vpop.f32.mrb[0].mxu0
    %v209 = vadd.f32 %v59, %v208
    %v210 = vpop.f32.mrb[0].mxu0
    %v211 = vadd.f32 %v63, %v210
    %v212 = vpop.f32.mrb[0].mxu0
    %v213 = vadd.f32 %v59, %v212
    %v214 = vpop.f32.mrb[0].mxu0
    %v215 = vadd.f32 %v63, %v214
    %216 = vmatprep.mubr.bf16.mxu0 0
    %217 = vmatmul.mubr.bf16.gmra.mrb[0].mxu0 %v134
    %v218 = vpop.f32.mrb[0].mxu0
    %v219 = vadd.f32 %v59, %v218
    %v220 = vpop.f32.mrb[0].mxu0
    %v221 = vadd.f32 %v63, %v220
    %v222 = vpop.f32.mrb[0].mxu0
    %v223 = vadd.f32 %v59, %v222
    %v224 = vpop.f32.mrb[0].mxu0
    %v225 = vadd.f32 %v63, %v224
    %226 = vmatprep.mubr.bf16.mxu0 0
    %227 = vmatmul.mubr.bf16.gmra.mrb[0].mxu0 %v137
    %v228 = vpop.f32.mrb[0].mxu0
    %v229 = vadd.f32 %v59, %v228
    %v230 = vpop.f32.mrb[0].mxu0
    %v231 = vadd.f32 %v63, %v230
    %v232 = vpop.f32.mrb[0].mxu0
    %v233 = vadd.f32 %v59, %v232
    %v234 = vpop.f32.mrb[0].mxu0
    %v235 = vadd.f32 %v63, %v234
    %236 = vmatprep.mubr.bf16.mxu0 0
    %237 = vmatmul.mubr.bf16.gmra.mrb[0].mxu0 %v140
    %v238 = vpop.f32.mrb[0].mxu0
    %v239 = vadd.f32 %v59, %v238
    %v240 = vpop.f32.mrb[0].mxu0
    %v241 = vadd.f32 %v63, %v240
    %v242 = vpop.f32.mrb[0].mxu0
    %v243 = vadd.f32 %v59, %v242
    %v244 = vpop.f32.mrb[0].mxu0
    %v245 = vadd.f32 %v63, %v244
    %246 = vmatprep.mubr.bf16.mxu0 0
    %247 = vmatmul.mubr.bf16.gmra.mrb[0].mxu0 %v143
    %v248 = vpop.f32.mrb[0].mxu0
    %v249 = vadd.f32 %v59, %v248
    %v250 = vpop.f32.mrb[0].mxu0
    %v251 = vadd.f32 %v63, %v250
    %v252 = vpop.f32.mrb[0].mxu0
    %v253 = vadd.f32 %v59, %v252
    %v254 = vpop.f32.mrb[0].mxu0
    %v255 = vadd.f32 %v63, %v254
    %256 = vmatprep.mubr.bf16.mxu0 0
    %257 = vmatmul.mubr.bf16.gmra.mrb[0].mxu0 %v146
    %v258 = vpop.f32.mrb[0].mxu0
    %v259 = vadd.f32 %v59, %v258
    %v260 = vpop.f32.mrb[0].mxu0
    %v261 = vadd.f32 %v63, %v260
    %v262 = vpop.f32.mrb[0].mxu0
    %v263 = vadd.f32 %v59, %v262
    %v264 = vpop.f32.mrb[0].mxu0
    %v265 = vadd.f32 %v63, %v264
    %266 = vmatprep.mubr.bf16.mxu0 0
    %267 = vmatmul.mubr.bf16.gmra.mrb[0].mxu0 %v149
    %v268 = vpop.f32.mrb[0].mxu0
    %v269 = vadd.f32 %v59, %v268
    %v270 = vpop.f32.mrb[0].mxu0
    %v271 = vadd.f32 %v63, %v270
    %v272 = vpop.f32.mrb[0].mxu0
    %v273 = vadd.f32 %v59, %v272
    %v274 = vpop.f32.mrb[0].mxu0
    %v275 = vadd.f32 %v63, %v274
    %276 = vdwg.mxu0
    %277 = vmatprep.subr.bf16.mxu0 %v162
    %278 = vmatpush1.bf16.msra.mxu0 %v159
    %279 = vmatprep.subr.bf16.mxu0 0
    %280 = vmatpush1.bf16.msra.mxu0 0
    %281 = vmatprep.subr.bf16.mxu0 0
    %282 = vmatpush1.bf16.msra.mxu0 0
    %283 = vmatprep.subr.bf16.mxu0 0
    %284 = vmatpush1.bf16.msra.mxu0 0
    %285 = vmatprep.subr.bf16.mxu0 0
    %286 = vmatpush1.bf16.msra.mxu0 0
    %287 = vmatprep.subr.bf16.mxu0 0
    %288 = vmatpush1.bf16.msra.mxu0 0
    %289 = vmatprep.subr.bf16.mxu0 0
    %290 = vmatpush1.bf16.msra.mxu0 0
    %291 = vmatprep.subr.bf16.mxu0 0
    %292 = vmatpush1.bf16.msra.mxu0 0
    %293 = vmatprep.subr.bf16.mxu0 0
    %294 = vmatpush1.bf16.msra.mxu0 0
    %295 = vmatprep.subr.bf16.mxu0 0
    %296 = vmatpush1.bf16.msra.mxu0 0
    %297 = vmatprep.subr.bf16.mxu0 0
    %298 = vmatpush1.bf16.msra.mxu0 0
    %299 = vmatprep.subr.bf16.mxu0 0
    %300 = vmatpush1.bf16.msra.mxu0 0
    %301 = vmatprep.subr.bf16.mxu0 0
    %302 = vmatpush1.bf16.msra.mxu0 0
    %303 = vmatprep.subr.bf16.mxu0 0
    %304 = vmatpush1.bf16.msra.mxu0 0
    %305 = vmatprep.subr.bf16.mxu0 0
    %306 = vmatpush1.bf16.msra.mxu0 0
    %307 = vmatprep.subr.bf16.mxu0 0
    %308 = vmatpush1.bf16.msra.mxu0 0
    %309 = vmatprep.mubr.bf16.mxu0 0
    %310 = vmatmul.mubr.bf16.gmra.mrb[0].mxu0 %v128
    %v311 = vpop.f32.mrb[0].mxu0
    %v312 = vadd.f32 %v67, %v311
    %v313 = vpop.f32.mrb[0].mxu0
    %v314 = vadd.f32 %v71, %v313
    %v315 = vpop.f32.mrb[0].mxu0
    %v316 = vadd.f32 %v67, %v315
    %v317 = vpop.f32.mrb[0].mxu0
    %v318 = vadd.f32 %v71, %v317
    %319 = vmatprep.mubr.bf16.mxu0 0
    %320 = vmatmul.mubr.bf16.gmra.mrb[0].mxu0 %v131
    %v321 = vpop.f32.mrb[0].mxu0
    %v322 = vadd.f32 %v67, %v321
    %v323 = vpop.f32.mrb[0].mxu0
    %v324 = vadd.f32 %v71, %v323
    %v325 = vpop.f32.mrb[0].mxu0
    %v326 = vadd.f32 %v67, %v325
    %v327 = vpop.f32.mrb[0].mxu0
    %v328 = vadd.f32 %v71, %v327
    %329 = vmatprep.mubr.bf16.mxu0 0
    %330 = vmatmul.mubr.bf16.gmra.mrb[0].mxu0 %v134
    %v331 = vpop.f32.mrb[0].mxu0
    %v332 = vadd.f32 %v67, %v331
    %v333 = vpop.f32.mrb[0].mxu0
    %v334 = vadd.f32 %v71, %v333
    %v335 = vpop.f32.mrb[0].mxu0
    %v336 = vadd.f32 %v67, %v335
    %v337 = vpop.f32.mrb[0].mxu0
    %v338 = vadd.f32 %v71, %v337
    %339 = vmatprep.mubr.bf16.mxu0 0
    %340 = vmatmul.mubr.bf16.gmra.mrb[0].mxu0 %v137
    %v341 = vpop.f32.mrb[0].mxu0
    %v342 = vadd.f32 %v67, %v341
    %v343 = vpop.f32.mrb[0].mxu0
    %v344 = vadd.f32 %v71, %v343
    %v345 = vpop.f32.mrb[0].mxu0
    %v346 = vadd.f32 %v67, %v345
    %v347 = vpop.f32.mrb[0].mxu0
    %v348 = vadd.f32 %v71, %v347
    %349 = vmatprep.mubr.bf16.mxu0 0
    %350 = vmatmul.mubr.bf16.gmra.mrb[0].mxu0 %v140
    %v351 = vpop.f32.mrb[0].mxu0
    %v352 = vadd.f32 %v67, %v351
    %v353 = vpop.f32.mrb[0].mxu0
    %v354 = vadd.f32 %v71, %v353
    %v355 = vpop.f32.mrb[0].mxu0
    %v356 = vadd.f32 %v67, %v355
    %v357 = vpop.f32.mrb[0].mxu0
    %v358 = vadd.f32 %v71, %v357
    %359 = vmatprep.mubr.bf16.mxu0 0
    %360 = vmatmul.mubr.bf16.gmra.mrb[0].mxu0 %v143
    %v361 = vpop.f32.mrb[0].mxu0
    %v362 = vadd.f32 %v67, %v361
    %v363 = vpop.f32.mrb[0].mxu0
    %v364 = vadd.f32 %v71, %v363
    %v365 = vpop.f32.mrb[0].mxu0
    %v366 = vadd.f32 %v67, %v365
    %v367 = vpop.f32.mrb[0].mxu0
    %v368 = vadd.f32 %v71, %v367
    %369 = vmatprep.mubr.bf16.mxu0 0
    %370 = vmatmul.mubr.bf16.gmra.mrb[0].mxu0 %v146
    %v371 = vpop.f32.mrb[0].mxu0
    %v372 = vadd.f32 %v67, %v371
    %v373 = vpop.f32.mrb[0].mxu0
    %v374 = vadd.f32 %v71, %v373
    %v375 = vpop.f32.mrb[0].mxu0
    %v376 = vadd.f32 %v67, %v375
    %v377 = vpop.f32.mrb[0].mxu0
    %v378 = vadd.f32 %v71, %v377
    %379 = vmatprep.mubr.bf16.mxu0 0
    %380 = vmatmul.mubr.bf16.gmra.mrb[0].mxu0 %v149
    %v381 = vpop.f32.mrb[0].mxu0
    %v382 = vadd.f32 %v67, %v381
    %v383 = vpop.f32.mrb[0].mxu0
    %v384 = vadd.f32 %v71, %v383
    %v385 = vpop.f32.mrb[0].mxu0
    %v386 = vadd.f32 %v67, %v385
    %v387 = vpop.f32.mrb[0].mxu0
    %v388 = vadd.f32 %v71, %v387
    %389 = vdwg.mxu0
    %390 = vst [vmem:[#allocation2] sm:$0xff] %v199
    %391 = vst [vmem:[#allocation2 + $0x8] sm:$0xff] %v201
    %392 = vst [vmem:[#allocation2 + $0x10] sm:$0xff] %v312
    %393 = vst [vmem:[#allocation2 + $0x18] sm:$0xff] %v314
    %394 = vst [vmem:[#allocation2 + $0x20] sm:$0xff] %v203
    %395 = vst [vmem:[#allocation2 + $0x28] sm:$0xff] %v205
    %396 = vst [vmem:[#allocation2 + $0x30] sm:$0xff] %v316
    %397 = vst [vmem:[#allocation2 + $0x38] sm:$0xff] %v318
    %398 = vst [vmem:[#allocation2 + $0x40] sm:$0xff] %v209
    %399 = vst [vmem:[#allocation2 + $0x48] sm:$0xff] %v211
    %400 = vst [vmem:[#allocation2 + $0x50] sm:$0xff] %v322
    %401 = vst [vmem:[#allocation2 + $0x58] sm:$0xff] %v324
    %402 = vst [vmem:[#allocation2 + $0x60] sm:$0xff] %v213
    %403 = vst [vmem:[#allocation2 + $0x68] sm:$0xff] %v215
    %404 = vst [vmem:[#allocation2 + $0x70] sm:$0xff] %v326
    %405 = vst [vmem:[#allocation2 + $0x78] sm:$0xff] %v328
    %406 = vst [vmem:[#allocation2 + $0x80] sm:$0xff] %v219
    %407 = vst [vmem:[#allocation2 + $0x88] sm:$0xff] %v221
    %408 = vst [vmem:[#allocation2 + $0x90] sm:$0xff] %v332
    %409 = vst [vmem:[#allocation2 + $0x98] sm:$0xff] %v334
    %410 = vst [vmem:[#allocation2 + $0xa0] sm:$0xff] %v223
    %411 = vst [vmem:[#allocation2 + $0xa8] sm:$0xff] %v225
    %412 = vst [vmem:[#allocation2 + $0xb0] sm:$0xff] %v336
    %413 = vst [vmem:[#allocation2 + $0xb8] sm:$0xff] %v338
    %414 = vst [vmem:[#allocation2 + $0xc0] sm:$0xff] %v229
    %415 = vst [vmem:[#allocation2 + $0xc8] sm:$0xff] %v231
    %416 = vst [vmem:[#allocation2 + $0xd0] sm:$0xff] %v342
    %417 = vst [vmem:[#allocation2 + $0xd8] sm:$0xff] %v344
    %418 = vst [vmem:[#allocation2 + $0xe0] sm:$0xff] %v233
    %419 = vst [vmem:[#allocation2 + $0xe8] sm:$0xff] %v235
    %420 = vst [vmem:[#allocation2 + $0xf0] sm:$0xff] %v346
    %421 = vst [vmem:[#allocation2 + $0xf8] sm:$0xff] %v348
    %422 = vst [vmem:[#allocation2 + $0x100] sm:$0xff] %v239
    %423 = vst [vmem:[#allocation2 + $0x108] sm:$0xff] %v241
    %424 = vst [vmem:[#allocation2 + $0x110] sm:$0xff] %v352
    %425 = vst [vmem:[#allocation2 + $0x118] sm:$0xff] %v354
    %426 = vst [vmem:[#allocation2 + $0x120] sm:$0xff] %v243
    %427 = vst [vmem:[#allocation2 + $0x128] sm:$0xff] %v245
    %428 = vst [vmem:[#allocation2 + $0x130] sm:$0xff] %v356
    %429 = vst [vmem:[#allocation2 + $0x138] sm:$0xff] %v358
    %430 = vst [vmem:[#allocation2 + $0x140] sm:$0xff] %v249
    %431 = vst [vmem:[#allocation2 + $0x148] sm:$0xff] %v251
    %432 = vst [vmem:[#allocation2 + $0x150] sm:$0xff] %v362
    %433 = vst [vmem:[#allocation2 + $0x158] sm:$0xff] %v364
    %434 = vst [vmem:[#allocation2 + $0x160] sm:$0xff] %v253
    %435 = vst [vmem:[#allocation2 + $0x168] sm:$0xff] %v255
    %436 = vst [vmem:[#allocation2 + $0x170] sm:$0xff] %v366
    %437 = vst [vmem:[#allocation2 + $0x178] sm:$0xff] %v368
    %438 = vst [vmem:[#allocation2 + $0x180] sm:$0xff] %v259
    %439 = vst [vmem:[#allocation2 + $0x188] sm:$0xff] %v261
    %440 = vst [vmem:[#allocation2 + $0x190] sm:$0xff] %v372
    %441 = vst [vmem:[#allocation2 + $0x198] sm:$0xff] %v374
    %442 = vst [vmem:[#allocation2 + $0x1a0] sm:$0xff] %v263
    %443 = vst [vmem:[#allocation2 + $0x1a8] sm:$0xff] %v265
    %444 = vst [vmem:[#allocation2 + $0x1b0] sm:$0xff] %v376
    %445 = vst [vmem:[#allocation2 + $0x1b8] sm:$0xff] %v378
    %446 = vst [vmem:[#allocation2 + $0x1c0] sm:$0xff] %v269
    %447 = vst [vmem:[#allocation2 + $0x1c8] sm:$0xff] %v271
    %448 = vst [vmem:[#allocation2 + $0x1d0] sm:$0xff] %v382
    %449 = vst [vmem:[#allocation2 + $0x1d8] sm:$0xff] %v384
    %450 = vst [vmem:[#allocation2 + $0x1e0] sm:$0xff] %v273
    %451 = vst [vmem:[#allocation2 + $0x1e8] sm:$0xff] %v275
    %452 = vst [vmem:[#allocation2 + $0x1f0] sm:$0xff] %v386
    %453 = vst [vmem:[#allocation2 + $0x1f8] sm:$0xff] %v388
    %v454 = vld [vmem:[#allocation2] sm:$0xff]
    %v455 = vld [vmem:[#allocation2 + $0x10] sm:$0xff]
    %v456 = vld [vmem:[#allocation2 + $0x18] sm:$0xff]
    %v457 = vld [vmem:[#allocation2 + $0x20] sm:$0xff]
    %v458 = vld [vmem:[#allocation2 + $0x30] sm:$0xff]
    %v459 = vld [vmem:[#allocation2 + $0x38] sm:$0xff]
    %v460 = vmul.f32 %v454, 0.5
    %v461 = vmul.f32 %v457, 0.5
    %v462 = vtanh.pop %v460
    %v463 = vtanh.pop %v461
    %v464 = vadd.f32 %v462, 1.0
    %v465 = vadd.f32 %v463, 1.0
    %v466 = vmul.f32 %v464, 0.5
    %v467 = vmul.f32 %v465, 0.5
    %v468 = vtanh.pop %v455
    %v469 = vtanh.pop %v458
    %v470 = vmul.f32 %v456, 0.5
    %v471 = vmul.f32 %v459, 0.5
    %v472 = vtanh.pop %v470
    %v473 = vtanh.pop %v471
    %v474 = vadd.f32 %v472, 1.0
    %v475 = vadd.f32 %v473, 1.0
    %v476 = vmul.f32 %v474, 0.5
    %v477 = vmul.f32 %v475, 0.5
    %v478 = vmul.f32 %v466, %v468
    %v479 = vmul.f32 %v467, %v469
    %v480 = vtanh.pop %v478
    %v481 = vtanh.pop %v479
    %v482 = vmul.f32 %v476, %v480
    %v483 = vmul.f32 %v477, %v481
    %v484 = vld [vmem:[#allocation2 + $0x40] sm:$0xff]
    %v485 = vld [vmem:[#allocation2 + $0x48] sm:$0xff]
    %v486 = vld [vmem:[#allocation2 + $0x50] sm:$0xff]
    %v487 = vld [vmem:[#allocation2 + $0x58] sm:$0xff]
    %v488 = vld [vmem:[#allocation2 + $0x60] sm:$0xff]
    %v489 = vld [vmem:[#allocation2 + $0x68] sm:$0xff]
    %v490 = vld [vmem:[#allocation2 + $0x70] sm:$0xff]
    %v491 = vld [vmem:[#allocation2 + $0x78] sm:$0xff]
    %v492 = vpack.c.bf16 %v483, %v482
    %v493 = vld [vmem:[%s3] sm:$0xff]
    %v494 = vld [vmem:[%s3 + $0x8] sm:$0xff]
    %v495 = vld [vmem:[%s3 + $0x10] sm:$0xff]
    %v496 = vld [vmem:[%s3 + $0x18] sm:$0xff]
    %v497 = vld [vmem:[%s3 + $0x20] sm:$0xff]
    %v498 = vld [vmem:[%s3 + $0x28] sm:$0xff]
    %v499 = vld [vmem:[%s3 + $0x30] sm:$0xff]
    %v500 = vld [vmem:[%s3 + $0x38] sm:$0xff]
    %v501 = vld [vmem:[%s3 + $0x40] sm:$0xff]
    %v502 = vld [vmem:[%s3 + $0x48] sm:$0xff]
    %v503 = vld [vmem:[%s3 + $0x50] sm:$0xff]
    %v504 = vld [vmem:[%s3 + $0x58] sm:$0xff]
    %v505 = vld [vmem:[%s3 + $0x60] sm:$0xff]
    %v506 = vld [vmem:[%s3 + $0x68] sm:$0xff]
    %v507 = vld [vmem:[%s3 + $0x70] sm:$0xff]
    %v508 = vld [vmem:[%s3 + $0x78] sm:$0xff]
    %v509 = vld [vmem:[%s3 + $0x80] sm:$0xff]
    %v510 = vld [vmem:[%s3 + $0x88] sm:$0xff]
    %v511 = vld [vmem:[%s3 + $0x90] sm:$0xff]
    %v512 = vld [vmem:[%s3 + $0x98] sm:$0xff]
    %v513 = vld [vmem:[%s3 + $0xa0] sm:$0xff]
    %v514 = vld [vmem:[%s3 + $0xa8] sm:$0xff]
    %v515 = vld [vmem:[%s3 + $0xb0] sm:$0xff]
    %v516 = vld [vmem:[%s3 + $0xb8] sm:$0xff]
    %v517 = vld [vmem:[%s3 + $0xc0] sm:$0xff]
    %v518 = vld [vmem:[%s3 + $0xc8] sm:$0xff]
    %v519 = vld [vmem:[%s3 + $0xd0] sm:$0xff]
    %v520 = vld [vmem:[%s3 + $0xd8] sm:$0xff]
    %v521 = vld [vmem:[%s3 + $0xe0] sm:$0xff]
    %v522 = vld [vmem:[%s3 + $0xe8] sm:$0xff]
    %v523 = vld [vmem:[%s3 + $0xf0] sm:$0xff]
    %v524 = vld [vmem:[%s3 + $0xf8] sm:$0xff]
    %v557 = vunpack.c.l.b16 %v493
    %v558 = vunpack.c.h.b16 %v493
    %v559 = vunpack.c.l.b16 %v494
    %v560 = vunpack.c.h.b16 %v494
    %v561 = vunpack.c.l.b16 %v495
    %v562 = vunpack.c.h.b16 %v495
    %v563 = vunpack.c.l.b16 %v496
    %v564 = vunpack.c.h.b16 %v496
    %v565 = vunpack.c.l.b16 %v497
    %v566 = vunpack.c.h.b16 %v497
    %v567 = vunpack.c.l.b16 %v498
    %v568 = vunpack.c.h.b16 %v498
    %v569 = vunpack.c.l.b16 %v499
    %v570 = vunpack.c.h.b16 %v499
    %v571 = vunpack.c.l.b16 %v500
    %v572 = vunpack.c.h.b16 %v500
    %v573 = vunpack.c.l.b16 %v501
    %v574 = vunpack.c.h.b16 %v501
    %v575 = vunpack.c.l.b16 %v502
    %v576 = vunpack.c.h.b16 %v502
    %v577 = vunpack.c.l.b16 %v503
    %v578 = vunpack.c.h.b16 %v503
    %v579 = vunpack.c.l.b16 %v504
    %v580 = vunpack.c.h.b16 %v504
    %v581 = vunpack.c.l.b16 %v505
    %v582 = vunpack.c.h.b16 %v505
    %v583 = vunpack.c.l.b16 %v506
    %v584 = vunpack.c.h.b16 %v506
    %v585 = vunpack.c.l.b16 %v507
    %v586 = vunpack.c.h.b16 %v507
    %v587 = vunpack.c.l.b16 %v508
    %v588 = vunpack.c.h.b16 %v508
    %v589 = vunpack.c.l.b16 %v509
    %v590 = vunpack.c.h.b16 %v509
    %v591 = vunpack.c.l.b16 %v510
    %v592 = vunpack.c.h.b16 %v510
    %v593 = vunpack.c.l.b16 %v511
    %v594 = vunpack.c.h.b16 %v511
    %v595 = vunpack.c.l.b16 %v512
    %v596 = vunpack.c.h.b16 %v512
    %v597 = vunpack.c.l.b16 %v513
    %v598 = vunpack.c.h.b16 %v513
    %v599 = vunpack.c.l.b16 %v514
    %v600 = vunpack.c.h.b16 %v514
    %v601 = vunpack.c.l.b16 %v515
    %v602 = vunpack.c.h.b16 %v515
    %v603 = vunpack.c.l.b16 %v516
    %v604 = vunpack.c.h.b16 %v516
    %v605 = vunpack.c.l.b16 %v517
    %v606 = vunpack.c.h.b16 %v517
    %v607 = vunpack.c.l.b16 %v518
    %v608 = vunpack.c.h.b16 %v518
    %v609 = vunpack.c.l.b16 %v519
    %v610 = vunpack.c.h.b16 %v519
    %v611 = vunpack.c.l.b16 %v520
    %v612 = vunpack.c.h.b16 %v520
    %v613 = vunpack.c.l.b16 %v521
    %v614 = vunpack.c.h.b16 %v521
    %v615 = vunpack.c.l.b16 %v522
    %v616 = vunpack.c.h.b16 %v522
    %v617 = vunpack.c.l.b16 %v523
    %v618 = vunpack.c.h.b16 %v523
    %v619 = vunpack.c.l.b16 %v524
    %v620 = vunpack.c.h.b16 %v524
    %v621 = vpack.c.b16 %v561, %v557
    %v622 = vpack.c.b16 %v562, %v558
    %v623 = vpack.c.b16 %v563, %v559
    %v624 = vpack.c.b16 %v564, %v560
    %v625 = vpack.c.b16 %v569, %v565
    %v626 = vpack.c.b16 %v570, %v566
    %v627 = vpack.c.b16 %v571, %v567
    %v628 = vpack.c.b16 %v572, %v568
    %v629 = vpack.c.b16 %v577, %v573
    %v630 = vpack.c.b16 %v578, %v574
    %v631 = vpack.c.b16 %v579, %v575
    %v632 = vpack.c.b16 %v580, %v576
    %v633 = vpack.c.b16 %v585, %v581
    %v634 = vpack.c.b16 %v586, %v582
    %v635 = vpack.c.b16 %v587, %v583
    %v636 = vpack.c.b16 %v588, %v584
    %v637 = vpack.c.b16 %v593, %v589
    %v638 = vpack.c.b16 %v594, %v590
    %v639 = vpack.c.b16 %v595, %v591
    %v640 = vpack.c.b16 %v596, %v592
    %v641 = vpack.c.b16 %v601, %v597
    %v642 = vpack.c.b16 %v602, %v598
    %v643 = vpack.c.b16 %v603, %v599
    %v644 = vpack.c.b16 %v604, %v600
    %v645 = vpack.c.b16 %v609, %v605
    %v646 = vpack.c.b16 %v610, %v606
    %v647 = vpack.c.b16 %v611, %v607
    %v648 = vpack.c.b16 %v612, %v608
    %v649 = vpack.c.b16 %v617, %v613
    %v650 = vpack.c.b16 %v618, %v614
    %v651 = vpack.c.b16 %v619, %v615
    %v652 = vpack.c.b16 %v620, %v616
    %685 = vmatprep.subr.bf16.mxu0 %v622
    %686 = vmatpush1.bf16.msra.mxu0 %v621
    %687 = vmatprep.subr.bf16.mxu0 %v626
    %688 = vmatpush1.bf16.msra.mxu0 %v625
    %689 = vmatprep.subr.bf16.mxu0 %v630
    %690 = vmatpush1.bf16.msra.mxu0 %v629
    %691 = vmatprep.subr.bf16.mxu0 %v634
    %692 = vmatpush1.bf16.msra.mxu0 %v633
    %693 = vmatprep.subr.bf16.mxu0 %v638
    %694 = vmatpush1.bf16.msra.mxu0 %v637
    %695 = vmatprep.subr.bf16.mxu0 %v642
    %696 = vmatpush1.bf16.msra.mxu0 %v641
    %697 = vmatprep.subr.bf16.mxu0 %v646
    %698 = vmatpush1.bf16.msra.mxu0 %v645
    %699 = vmatprep.subr.bf16.mxu0 %v650
    %700 = vmatpush1.bf16.msra.mxu0 %v649
    %701 = vmatprep.subr.bf16.mxu0 0
    %702 = vmatpush1.bf16.msra.mxu0 0
    %703 = vmatprep.subr.bf16.mxu0 0
    %704 = vmatpush1.bf16.msra.mxu0 0
    %705 = vmatprep.subr.bf16.mxu0 0
    %706 = vmatpush1.bf16.msra.mxu0 0
    %707 = vmatprep.subr.bf16.mxu0 0
    %708 = vmatpush1.bf16.msra.mxu0 0
    %709 = vmatprep.subr.bf16.mxu0 0
    %710 = vmatpush1.bf16.msra.mxu0 0
    %711 = vmatprep.subr.bf16.mxu0 0
    %712 = vmatpush1.bf16.msra.mxu0 0
    %713 = vmatprep.subr.bf16.mxu0 0
    %714 = vmatpush1.bf16.msra.mxu0 0
    %715 = vmatprep.subr.bf16.mxu0 0
    %716 = vmatpush1.bf16.msra.mxu0 0
    %717 = vmatprep.mubr.bf16.mxu0 0
    %718 = vmatmul.mubr.bf16.gmra.mrb[0].mxu0 %v492
    %v719 = vpop.f32.mrb[0].mxu0
    %v720 = vadd.f32 0.0, %v719
    %v721 = vpop.f32.mrb[0].mxu0
    %v722 = vadd.f32 0.0, %v721
    %v723 = vpop.f32.mrb[0].mxu0
    %v724 = vadd.f32 0.0, %v723
    %v725 = vpop.f32.mrb[0].mxu0
    %v726 = vadd.f32 0.0, %v725
    %727 = vdwg.mxu0
    %728 = vmatprep.subr.bf16.mxu0 %v624
    %729 = vmatpush1.bf16.msra.mxu0 %v623
    %730 = vmatprep.subr.bf16.mxu0 %v628
    %731 = vmatpush1.bf16.msra.mxu0 %v627
    %732 = vmatprep.subr.bf16.mxu0 %v632
    %733 = vmatpush1.bf16.msra.mxu0 %v631
    %734 = vmatprep.subr.bf16.mxu0 %v636
    %735 = vmatpush1.bf16.msra.mxu0 %v635
    %736 = vmatprep.subr.bf16.mxu0 %v640
    %737 = vmatpush1.bf16.msra.mxu0 %v639
    %738 = vmatprep.subr.bf16.mxu0 %v644
    %739 = vmatpush1.bf16.msra.mxu0 %v643
    %740 = vmatprep.subr.bf16.mxu0 %v648
    %741 = vmatpush1.bf16.msra.mxu0 %v647
    %742 = vmatprep.subr.bf16.mxu0 %v652
    %743 = vmatpush1.bf16.msra.mxu0 %v651
    %744 = vmatprep.subr.bf16.mxu0 0
    %745 = vmatpush1.bf16.msra.mxu0 0
    %746 = vmatprep.subr.bf16.mxu0 0
    %747 = vmatpush1.bf16.msra.mxu0 0
    %748 = vmatprep.subr.bf16.mxu0 0
    %749 = vmatpush1.bf16.msra.mxu0 0
    %750 = vmatprep.subr.bf16.mxu0 0
    %751 = vmatpush1.bf16.msra.mxu0 0
    %752 = vmatprep.subr.bf16.mxu0 0
    %753 = vmatpush1.bf16.msra.mxu0 0
    %754 = vmatprep.subr.bf16.mxu0 0
    %755 = vmatpush1.bf16.msra.mxu0 0
    %756 = vmatprep.subr.bf16.mxu0 0
    %757 = vmatpush1.bf16.msra.mxu0 0
    %758 = vmatprep.subr.bf16.mxu0 0
    %759 = vmatpush1.bf16.msra.mxu0 0
    %760 = vmatprep.mubr.bf16.mxu0 0
    %761 = vmatmul.mubr.bf16.gmra.mrb[0].mxu0 %v492
    %v762 = vpop.f32.mrb[0].mxu0
    %v763 = vadd.f32 0.0, %v762
    %v764 = vpop.f32.mrb[0].mxu0
    %v765 = vadd.f32 0.0, %v764
    %v766 = vpop.f32.mrb[0].mxu0
    %v767 = vadd.f32 0.0, %v766
    %v768 = vpop.f32.mrb[0].mxu0
    %v769 = vadd.f32 0.0, %v768
    %770 = vdwg.mxu0
    %v771 = vadd.f32 %v484, %v720
    %v772 = vadd.f32 %v485, %v722
    %v773 = vadd.f32 %v486, %v763
    %v774 = vadd.f32 %v487, %v765
    %v775 = vadd.f32 %v488, %v724
    %v776 = vadd.f32 %v489, %v726
    %v777 = vadd.f32 %v490, %v767
    %v778 = vadd.f32 %v491, %v769
    %v779 = vmul.f32 %v771, 0.5
    %v780 = vmul.f32 %v775, 0.5
    %v781 = vtanh.pop %v779
    %v782 = vtanh.pop %v780
    %v783 = vadd.f32 %v781, 1.0
    %v784 = vadd.f32 %v782, 1.0
    %v785 = vmul.f32 %v783, 0.5
    %v786 = vmul.f32 %v784, 0.5
    %v787 = vmul.f32 %v772, 0.5
    %v788 = vmul.f32 %v776, 0.5
    %v789 = vtanh.pop %v787
    %v790 = vtanh.pop %v788
    %v791 = vadd.f32 %v789, 1.0
    %v792 = vadd.f32 %v790, 1.0
    %v793 = vmul.f32 %v791, 0.5
    %v794 = vmul.f32 %v792, 0.5
    %v795 = vtanh.pop %v773
    %v796 = vtanh.pop %v777
    %v797 = vmul.f32 %v774, 0.5
    %v798 = vmul.f32 %v778, 0.5
    %v799 = vtanh.pop %v797
    %v800 = vtanh.pop %v798
    %v801 = vadd.f32 %v799, 1.0
    %v802 = vadd.f32 %v800, 1.0
    %v803 = vmul.f32 %v801, 0.5
    %v804 = vmul.f32 %v802, 0.5
    %v805 = vmul.f32 %v793, %v478
    %v806 = vmul.f32 %v794, %v479
    %v807 = vmul.f32 %v785, %v795
    %v808 = vmul.f32 %v786, %v796
    %v809 = vadd.f32 %v805, %v807
    %v810 = vadd.f32 %v806, %v808
    %v811 = vtanh.pop %v809
    %v812 = vtanh.pop %v810
    %v813 = vmul.f32 %v803, %v811
    %v814 = vmul.f32 %v804, %v812
    %v815 = vld [vmem:[#allocation2 + $0x80] sm:$0xff]
    %v816 = vld [vmem:[#allocation2 + $0x88] sm:$0xff]
    %v817 = vld [vmem:[#allocation2 + $0x90] sm:$0xff]
    %v818 = vld [vmem:[#allocation2 + $0x98] sm:$0xff]
    %v819 = vld [vmem:[#allocation2 + $0xa0] sm:$0xff]
    %v820 = vld [vmem:[#allocation2 + $0xa8] sm:$0xff]
    %v821 = vld [vmem:[#allocation2 + $0xb0] sm:$0xff]
    %v822 = vld [vmem:[#allocation2 + $0xb8] sm:$0xff]
    %v823 = vpack.c.bf16 %v814, %v813
    %824 = vmatprep.subr.bf16.mxu0 %v622
    %825 = vmatpush1.bf16.msra.mxu0 %v621
    %826 = vmatprep.subr.bf16.mxu0 %v626
    %827 = vmatpush1.bf16.msra.mxu0 %v625
    %828 = vmatprep.subr.bf16.mxu0 %v630
    %829 = vmatpush1.bf16.msra.mxu0 %v629
    %830 = vmatprep.subr.bf16.mxu0 %v634
    %831 = vmatpush1.bf16.msra.mxu0 %v633
    %832 = vmatprep.subr.bf16.mxu0 %v638
    %833 = vmatpush1.bf16.msra.mxu0 %v637
    %834 = vmatprep.subr.bf16.mxu0 %v642
    %835 = vmatpush1.bf16.msra.mxu0 %v641
    %836 = vmatprep.subr.bf16.mxu0 %v646
    %837 = vmatpush1.bf16.msra.mxu0 %v645
    %838 = vmatprep.subr.bf16.mxu0 %v650
    %839 = vmatpush1.bf16.msra.mxu0 %v649
    %840 = vmatprep.subr.bf16.mxu0 0
    %841 = vmatpush1.bf16.msra.mxu0 0
    %842 = vmatprep.subr.bf16.mxu0 0
    %843 = vmatpush1.bf16.msra.mxu0 0
    %844 = vmatprep.subr.bf16.mxu0 0
    %845 = vmatpush1.bf16.msra.mxu0 0
    %846 = vmatprep.subr.bf16.mxu0 0
    %847 = vmatpush1.bf16.msra.mxu0 0
    %848 = vmatprep.subr.bf16.mxu0 0
    %849 = vmatpush1.bf16.msra.mxu0 0
    %850 = vmatprep.subr.bf16.mxu0 0
    %851 = vmatpush1.bf16.msra.mxu0 0
    %852 = vmatprep.subr.bf16.mxu0 0
    %853 = vmatpush1.bf16.msra.mxu0 0
    %854 = vmatprep.subr.bf16.mxu0 0
    %855 = vmatpush1.bf16.msra.mxu0 0
    %856 = vmatprep.mubr.bf16.mxu0 0
    %857 = vmatmul.mubr.bf16.gmra.mrb[0].mxu0 %v823
    %v858 = vpop.f32.mrb[0].mxu0
    %v859 = vadd.f32 0.0, %v858
    %v860 = vpop.f32.mrb[0].mxu0
    %v861 = vadd.f32 0.0, %v860
    %v862 = vpop.f32.mrb[0].mxu0
    %v863 = vadd.f32 0.0, %v862
    %v864 = vpop.f32.mrb[0].mxu0
    %v865 = vadd.f32 0.0, %v864
    %866 = vdwg.mxu0
    %867 = vmatprep.subr.bf16.mxu0 %v624
    %868 = vmatpush1.bf16.msra.mxu0 %v623
    %869 = vmatprep.subr.bf16.mxu0 %v628
    %870 = vmatpush1.bf16.msra.mxu0 %v627
    %871 = vmatprep.subr.bf16.mxu0 %v632
    %872 = vmatpush1.bf16.msra.mxu0 %v631
    %873 = vmatprep.subr.bf16.mxu0 %v636
    %874 = vmatpush1.bf16.msra.mxu0 %v635
    %875 = vmatprep.subr.bf16.mxu0 %v640
    %876 = vmatpush1.bf16.msra.mxu0 %v639
    %877 = vmatprep.subr.bf16.mxu0 %v644
    %878 = vmatpush1.bf16.msra.mxu0 %v643
    %879 = vmatprep.subr.bf16.mxu0 %v648
    %880 = vmatpush1.bf16.msra.mxu0 %v647
    %881 = vmatprep.subr.bf16.mxu0 %v652
    %882 = vmatpush1.bf16.msra.mxu0 %v651
    %883 = vmatprep.subr.bf16.mxu0 0
    %884 = vmatpush1.bf16.msra.mxu0 0
    %885 = vmatprep.subr.bf16.mxu0 0
    %886 = vmatpush1.bf16.msra.mxu0 0
    %887 = vmatprep.subr.bf16.mxu0 0
    %888 = vmatpush1.bf16.msra.mxu0 0
    %889 = vmatprep.subr.bf16.mxu0 0
    %890 = vmatpush1.bf16.msra.mxu0 0
    %891 = vmatprep.subr.bf16.mxu0 0
    %892 = vmatpush1.bf16.msra.mxu0 0
    %893 = vmatprep.subr.bf16.mxu0 0
    %894 = vmatpush1.bf16.msra.mxu0 0
    %895 = vmatprep.subr.bf16.mxu0 0
    %896 = vmatpush1.bf16.msra.mxu0 0
    %897 = vmatprep.subr.bf16.mxu0 0
    %898 = vmatpush1.bf16.msra.mxu0 0
    %899 = vmatprep.mubr.bf16.mxu0 0
    %900 = vmatmul.mubr.bf16.gmra.mrb[0].mxu0 %v823
    %v901 = vpop.f32.mrb[0].mxu0
    %v902 = vadd.f32 0.0, %v901
    %v903 = vpop.f32.mrb[0].mxu0
    %v904 = vadd.f32 0.0, %v903
    %v905 = vpop.f32.mrb[0].mxu0
    %v906 = vadd.f32 0.0, %v905
    %v907 = vpop.f32.mrb[0].mxu0
    %v908 = vadd.f32 0.0, %v907
    %909 = vdwg.mxu0
    %v910 = vadd.f32 %v815, %v859
    %v911 = vadd.f32 %v816, %v861
    %v912 = vadd.f32 %v817, %v902
    %v913 = vadd.f32 %v818, %v904
    %v914 = vadd.f32 %v819, %v863
    %v915 = vadd.f32 %v820, %v865
    %v916 = vadd.f32 %v821, %v906
    %v917 = vadd.f32 %v822, %v908
    %v918 = vmul.f32 %v910, 0.5
    %v919 = vmul.f32 %v914, 0.5
    %v920 = vtanh.pop %v918
    %v921 = vtanh.pop %v919
    %v922 = vadd.f32 %v920, 1.0
    %v923 = vadd.f32 %v921, 1.0
    %v924 = vmul.f32 %v922, 0.5
    %v925 = vmul.f32 %v923, 0.5
    %v926 = vmul.f32 %v911, 0.5
    %v927 = vmul.f32 %v915, 0.5
    %v928 = vtanh.pop %v926
    %v929 = vtanh.pop %v927
    %v930 = vadd.f32 %v928, 1.0
    %v931 = vadd.f32 %v929, 1.0
    %v932 = vmul.f32 %v930, 0.5
    %v933 = vmul.f32 %v931, 0.5
    %v934 = vtanh.pop %v912
    %v935 = vtanh.pop %v916
    %v936 = vmul.f32 %v913, 0.5
    %v937 = vmul.f32 %v917, 0.5
    %v938 = vtanh.pop %v936
    %v939 = vtanh.pop %v937
    %v940 = vadd.f32 %v938, 1.0
    %v941 = vadd.f32 %v939, 1.0
    %v942 = vmul.f32 %v940, 0.5
    %v943 = vmul.f32 %v941, 0.5
    %v944 = vmul.f32 %v932, %v809
    %v945 = vmul.f32 %v933, %v810
    %v946 = vmul.f32 %v924, %v934
    %v947 = vmul.f32 %v925, %v935
    %v948 = vadd.f32 %v944, %v946
    %v949 = vadd.f32 %v945, %v947
    %v950 = vtanh.pop %v948
    %v951 = vtanh.pop %v949
    %v952 = vmul.f32 %v942, %v950
    %v953 = vmul.f32 %v943, %v951
    %v954 = vld [vmem:[#allocation2 + $0xc0] sm:$0xff]
    %v955 = vld [vmem:[#allocation2 + $0xc8] sm:$0xff]
    %v956 = vld [vmem:[#allocation2 + $0xd0] sm:$0xff]
    %v957 = vld [vmem:[#allocation2 + $0xd8] sm:$0xff]
    %v958 = vld [vmem:[#allocation2 + $0xe0] sm:$0xff]
    %v959 = vld [vmem:[#allocation2 + $0xe8] sm:$0xff]
    %v960 = vld [vmem:[#allocation2 + $0xf0] sm:$0xff]
    %v961 = vld [vmem:[#allocation2 + $0xf8] sm:$0xff]
    %v962 = vpack.c.bf16 %v953, %v952
    %963 = vmatprep.subr.bf16.mxu0 %v622
    %964 = vmatpush1.bf16.msra.mxu0 %v621
    %965 = vmatprep.subr.bf16.mxu0 %v626
    %966 = vmatpush1.bf16.msra.mxu0 %v625
    %967 = vmatprep.subr.bf16.mxu0 %v630
    %968 = vmatpush1.bf16.msra.mxu0 %v629
    %969 = vmatprep.subr.bf16.mxu0 %v634
    %970 = vmatpush1.bf16.msra.mxu0 %v633
    %971 = vmatprep.subr.bf16.mxu0 %v638
    %972 = vmatpush1.bf16.msra.mxu0 %v637
    %973 = vmatprep.subr.bf16.mxu0 %v642
    %974 = vmatpush1.bf16.msra.mxu0 %v641
    %975 = vmatprep.subr.bf16.mxu0 %v646
    %976 = vmatpush1.bf16.msra.mxu0 %v645
    %977 = vmatprep.subr.bf16.mxu0 %v650
    %978 = vmatpush1.bf16.msra.mxu0 %v649
    %979 = vmatprep.subr.bf16.mxu0 0
    %980 = vmatpush1.bf16.msra.mxu0 0
    %981 = vmatprep.subr.bf16.mxu0 0
    %982 = vmatpush1.bf16.msra.mxu0 0
    %983 = vmatprep.subr.bf16.mxu0 0
    %984 = vmatpush1.bf16.msra.mxu0 0
    %985 = vmatprep.subr.bf16.mxu0 0
    %986 = vmatpush1.bf16.msra.mxu0 0
    %987 = vmatprep.subr.bf16.mxu0 0
    %988 = vmatpush1.bf16.msra.mxu0 0
    %989 = vmatprep.subr.bf16.mxu0 0
    %990 = vmatpush1.bf16.msra.mxu0 0
    %991 = vmatprep.subr.bf16.mxu0 0
    %992 = vmatpush1.bf16.msra.mxu0 0
    %993 = vmatprep.subr.bf16.mxu0 0
    %994 = vmatpush1.bf16.msra.mxu0 0
    %995 = vmatprep.mubr.bf16.mxu0 0
    %996 = vmatmul.mubr.bf16.gmra.mrb[0].mxu0 %v962
    %v997 = vpop.f32.mrb[0].mxu0
    %v998 = vadd.f32 0.0, %v997
    %v999 = vpop.f32.mrb[0].mxu0
    %v1000 = vadd.f32 0.0, %v999
    %v1001 = vpop.f32.mrb[0].mxu0
    %v1002 = vadd.f32 0.0, %v1001
    %v1003 = vpop.f32.mrb[0].mxu0
    %v1004 = vadd.f32 0.0, %v1003
    %1005 = vdwg.mxu0
    %1006 = vmatprep.subr.bf16.mxu0 %v624
    %1007 = vmatpush1.bf16.msra.mxu0 %v623
    %1008 = vmatprep.subr.bf16.mxu0 %v628
    %1009 = vmatpush1.bf16.msra.mxu0 %v627
    %1010 = vmatprep.subr.bf16.mxu0 %v632
    %1011 = vmatpush1.bf16.msra.mxu0 %v631
    %1012 = vmatprep.subr.bf16.mxu0 %v636
    %1013 = vmatpush1.bf16.msra.mxu0 %v635
    %1014 = vmatprep.subr.bf16.mxu0 %v640
    %1015 = vmatpush1.bf16.msra.mxu0 %v639
    %1016 = vmatprep.subr.bf16.mxu0 %v644
    %1017 = vmatpush1.bf16.msra.mxu0 %v643
    %1018 = vmatprep.subr.bf16.mxu0 %v648
    %1019 = vmatpush1.bf16.msra.mxu0 %v647
    %1020 = vmatprep.subr.bf16.mxu0 %v652
    %1021 = vmatpush1.bf16.msra.mxu0 %v651
    %1022 = vmatprep.subr.bf16.mxu0 0
    %1023 = vmatpush1.bf16.msra.mxu0 0
    %1024 = vmatprep.subr.bf16.mxu0 0
    %1025 = vmatpush1.bf16.msra.mxu0 0
    %1026 = vmatprep.subr.bf16.mxu0 0
    %1027 = vmatpush1.bf16.msra.mxu0 0
    %1028 = vmatprep.subr.bf16.mxu0 0
    %1029 = vmatpush1.bf16.msra.mxu0 0
    %1030 = vmatprep.subr.bf16.mxu0 0
    %1031 = vmatpush1.bf16.msra.mxu0 0
    %1032 = vmatprep.subr.bf16.mxu0 0
    %1033 = vmatpush1.bf16.msra.mxu0 0
    %1034 = vmatprep.subr.bf16.mxu0 0
    %1035 = vmatpush1.bf16.msra.mxu0 0
    %1036 = vmatprep.subr.bf16.mxu0 0
    %1037 = vmatpush1.bf16.msra.mxu0 0
    %1038 = vmatprep.mubr.bf16.mxu0 0
    %1039 = vmatmul.mubr.bf16.gmra.mrb[0].mxu0 %v962
    %v1040 = vpop.f32.mrb[0].mxu0
    %v1041 = vadd.f32 0.0, %v1040
    %v1042 = vpop.f32.mrb[0].mxu0
    %v1043 = vadd.f32 0.0, %v1042
    %v1044 = vpop.f32.mrb[0].mxu0
    %v1045 = vadd.f32 0.0, %v1044
    %v1046 = vpop.f32.mrb[0].mxu0
    %v1047 = vadd.f32 0.0, %v1046
    %1048 = vdwg.mxu0
    %v1049 = vadd.f32 %v954, %v998
    %v1050 = vadd.f32 %v955, %v1000
    %v1051 = vadd.f32 %v956, %v1041
    %v1052 = vadd.f32 %v957, %v1043
    %v1053 = vadd.f32 %v958, %v1002
    %v1054 = vadd.f32 %v959, %v1004
    %v1055 = vadd.f32 %v960, %v1045
    %v1056 = vadd.f32 %v961, %v1047
    %v1057 = vmul.f32 %v1049, 0.5
    %v1058 = vmul.f32 %v1053, 0.5
    %v1059 = vtanh.pop %v1057
    %v1060 = vtanh.pop %v1058
    %v1061 = vadd.f32 %v1059, 1.0
    %v1062 = vadd.f32 %v1060, 1.0
    %v1063 = vmul.f32 %v1061, 0.5
    %v1064 = vmul.f32 %v1062, 0.5
    %v1065 = vmul.f32 %v1050, 0.5
    %v1066 = vmul.f32 %v1054, 0.5
    %v1067 = vtanh.pop %v1065
    %v1068 = vtanh.pop %v1066
    %v1069 = vadd.f32 %v1067, 1.0
    %v1070 = vadd.f32 %v1068, 1.0
    %v1071 = vmul.f32 %v1069, 0.5
    %v1072 = vmul.f32 %v1070, 0.5
    %v1073 = vtanh.pop %v1051
    %v1074 = vtanh.pop %v1055
    %v1075 = vmul.f32 %v1052, 0.5
    %v1076 = vmul.f32 %v1056, 0.5
    %v1077 = vtanh.pop %v1075
    %v1078 = vtanh.pop %v1076
    %v1079 = vadd.f32 %v1077, 1.0
    %v1080 = vadd.f32 %v1078, 1.0
    %v1081 = vmul.f32 %v1079, 0.5
    %v1082 = vmul.f32 %v1080, 0.5
    %v1083 = vmul.f32 %v1071, %v948
    %v1084 = vmul.f32 %v1072, %v949
    %v1085 = vmul.f32 %v1063, %v1073
    %v1086 = vmul.f32 %v1064, %v1074
    %v1087 = vadd.f32 %v1083, %v1085
    %v1088 = vadd.f32 %v1084, %v1086
    %v1089 = vtanh.pop %v1087
    %v1090 = vtanh.pop %v1088
    %v1091 = vmul.f32 %v1081, %v1089
    %v1092 = vmul.f32 %v1082, %v1090
    %v1093 = vld [vmem:[#allocation2 + $0x100] sm:$0xff]
    %v1094 = vld [vmem:[#allocation2 + $0x108] sm:$0xff]
    %v1095 = vld [vmem:[#allocation2 + $0x110] sm:$0xff]
    %v1096 = vld [vmem:[#allocation2 + $0x118] sm:$0xff]
    %v1097 = vld [vmem:[#allocation2 + $0x120] sm:$0xff]
    %v1098 = vld [vmem:[#allocation2 + $0x128] sm:$0xff]
    %v1099 = vld [vmem:[#allocation2 + $0x130] sm:$0xff]
    %v1100 = vld [vmem:[#allocation2 + $0x138] sm:$0xff]
    %v1101 = vpack.c.bf16 %v1092, %v1091
    %1102 = vmatprep.subr.bf16.mxu0 %v622
    %1103 = vmatpush1.bf16.msra.mxu0 %v621
    %1104 = vmatprep.subr.bf16.mxu0 %v626
    %1105 = vmatpush1.bf16.msra.mxu0 %v625
    %1106 = vmatprep.subr.bf16.mxu0 %v630
    %1107 = vmatpush1.bf16.msra.mxu0 %v629
    %1108 = vmatprep.subr.bf16.mxu0 %v634
    %1109 = vmatpush1.bf16.msra.mxu0 %v633
    %1110 = vmatprep.subr.bf16.mxu0 %v638
    %1111 = vmatpush1.bf16.msra.mxu0 %v637
    %1112 = vmatprep.subr.bf16.mxu0 %v642
    %1113 = vmatpush1.bf16.msra.mxu0 %v641
    %1114 = vmatprep.subr.bf16.mxu0 %v646
    %1115 = vmatpush1.bf16.msra.mxu0 %v645
    %1116 = vmatprep.subr.bf16.mxu0 %v650
    %1117 = vmatpush1.bf16.msra.mxu0 %v649
    %1118 = vmatprep.subr.bf16.mxu0 0
    %1119 = vmatpush1.bf16.msra.mxu0 0
    %1120 = vmatprep.subr.bf16.mxu0 0
    %1121 = vmatpush1.bf16.msra.mxu0 0
    %1122 = vmatprep.subr.bf16.mxu0 0
    %1123 = vmatpush1.bf16.msra.mxu0 0
    %1124 = vmatprep.subr.bf16.mxu0 0
    %1125 = vmatpush1.bf16.msra.mxu0 0
    %1126 = vmatprep.subr.bf16.mxu0 0
    %1127 = vmatpush1.bf16.msra.mxu0 0
    %1128 = vmatprep.subr.bf16.mxu0 0
    %1129 = vmatpush1.bf16.msra.mxu0 0
    %1130 = vmatprep.subr.bf16.mxu0 0
    %1131 = vmatpush1.bf16.msra.mxu0 0
    %1132 = vmatprep.subr.bf16.mxu0 0
    %1133 = vmatpush1.bf16.msra.mxu0 0
    %1134 = vmatprep.mubr.bf16.mxu0 0
    %1135 = vmatmul.mubr.bf16.gmra.mrb[0].mxu0 %v1101
    %v1136 = vpop.f32.mrb[0].mxu0
    %v1137 = vadd.f32 0.0, %v1136
    %v1138 = vpop.f32.mrb[0].mxu0
    %v1139 = vadd.f32 0.0, %v1138
    %v1140 = vpop.f32.mrb[0].mxu0
    %v1141 = vadd.f32 0.0, %v1140
    %v1142 = vpop.f32.mrb[0].mxu0
    %v1143 = vadd.f32 0.0, %v1142
    %1144 = vdwg.mxu0
    %1145 = vmatprep.subr.bf16.mxu0 %v624
    %1146 = vmatpush1.bf16.msra.mxu0 %v623
    %1147 = vmatprep.subr.bf16.mxu0 %v628
    %1148 = vmatpush1.bf16.msra.mxu0 %v627
    %1149 = vmatprep.subr.bf16.mxu0 %v632
    %1150 = vmatpush1.bf16.msra.mxu0 %v631
    %1151 = vmatprep.subr.bf16.mxu0 %v636
    %1152 = vmatpush1.bf16.msra.mxu0 %v635
    %1153 = vmatprep.subr.bf16.mxu0 %v640
    %1154 = vmatpush1.bf16.msra.mxu0 %v639
    %1155 = vmatprep.subr.bf16.mxu0 %v644
    %1156 = vmatpush1.bf16.msra.mxu0 %v643
    %1157 = vmatprep.subr.bf16.mxu0 %v648
    %1158 = vmatpush1.bf16.msra.mxu0 %v647
    %1159 = vmatprep.subr.bf16.mxu0 %v652
    %1160 = vmatpush1.bf16.msra.mxu0 %v651
    %1161 = vmatprep.subr.bf16.mxu0 0
    %1162 = vmatpush1.bf16.msra.mxu0 0
    %1163 = vmatprep.subr.bf16.mxu0 0
    %1164 = vmatpush1.bf16.msra.mxu0 0
    %1165 = vmatprep.subr.bf16.mxu0 0
    %1166 = vmatpush1.bf16.msra.mxu0 0
    %1167 = vmatprep.subr.bf16.mxu0 0
    %1168 = vmatpush1.bf16.msra.mxu0 0
    %1169 = vmatprep.subr.bf16.mxu0 0
    %1170 = vmatpush1.bf16.msra.mxu0 0
    %1171 = vmatprep.subr.bf16.mxu0 0
    %1172 = vmatpush1.bf16.msra.mxu0 0
    %1173 = vmatprep.subr.bf16.mxu0 0
    %1174 = vmatpush1.bf16.msra.mxu0 0
    %1175 = vmatprep.subr.bf16.mxu0 0
    %1176 = vmatpush1.bf16.msra.mxu0 0
    %1177 = vmatprep.mubr.bf16.mxu0 0
    %1178 = vmatmul.mubr.bf16.gmra.mrb[0].mxu0 %v1101
    %v1179 = vpop.f32.mrb[0].mxu0
    %v1180 = vadd.f32 0.0, %v1179
    %v1181 = vpop.f32.mrb[0].mxu0
    %v1182 = vadd.f32 0.0, %v1181
    %v1183 = vpop.f32.mrb[0].mxu0
    %v1184 = vadd.f32 0.0, %v1183
    %v1185 = vpop.f32.mrb[0].mxu0
    %v1186 = vadd.f32 0.0, %v1185
    %1187 = vdwg.mxu0
    %v1188 = vadd.f32 %v1093, %v1137
    %v1189 = vadd.f32 %v1094, %v1139
    %v1190 = vadd.f32 %v1095, %v1180
    %v1191 = vadd.f32 %v1096, %v1182
    %v1192 = vadd.f32 %v1097, %v1141
    %v1193 = vadd.f32 %v1098, %v1143
    %v1194 = vadd.f32 %v1099, %v1184
    %v1195 = vadd.f32 %v1100, %v1186
    %v1196 = vmul.f32 %v1188, 0.5
    %v1197 = vmul.f32 %v1192, 0.5
    %v1198 = vtanh.pop %v1196
    %v1199 = vtanh.pop %v1197
    %v1200 = vadd.f32 %v1198, 1.0
    %v1201 = vadd.f32 %v1199, 1.0
    %v1202 = vmul.f32 %v1200, 0.5
    %v1203 = vmul.f32 %v1201, 0.5
    %v1204 = vmul.f32 %v1189, 0.5
    %v1205 = vmul.f32 %v1193, 0.5
    %v1206 = vtanh.pop %v1204
    %v1207 = vtanh.pop %v1205
    %v1208 = vadd.f32 %v1206, 1.0
    %v1209 = vadd.f32 %v1207, 1.0
    %v1210 = vmul.f32 %v1208, 0.5
    %v1211 = vmul.f32 %v1209, 0.5
    %v1212 = vtanh.pop %v1190
    %v1213 = vtanh.pop %v1194
    %v1214 = vmul.f32 %v1191, 0.5
    %v1215 = vmul.f32 %v1195, 0.5
    %v1216 = vtanh.pop %v1214
    %v1217 = vtanh.pop %v1215
    %v1218 = vadd.f32 %v1216, 1.0
    %v1219 = vadd.f32 %v1217, 1.0
    %v1220 = vmul.f32 %v1218, 0.5
    %v1221 = vmul.f32 %v1219, 0.5
    %v1222 = vmul.f32 %v1210, %v1087
    %v1223 = vmul.f32 %v1211, %v1088
    %v1224 = vmul.f32 %v1202, %v1212
    %v1225 = vmul.f32 %v1203, %v1213
    %v1226 = vadd.f32 %v1222, %v1224
    %v1227 = vadd.f32 %v1223, %v1225
    %v1228 = vtanh.pop %v1226
    %v1229 = vtanh.pop %v1227
    %v1230 = vmul.f32 %v1220, %v1228
    %v1231 = vmul.f32 %v1221, %v1229
    %v1232 = vld [vmem:[#allocation2 + $0x140] sm:$0xff]
    %v1233 = vld [vmem:[#allocation2 + $0x148] sm:$0xff]
    %v1234 = vld [vmem:[#allocation2 + $0x150] sm:$0xff]
    %v1235 = vld [vmem:[#allocation2 + $0x158] sm:$0xff]
    %v1236 = vld [vmem:[#allocation2 + $0x160] sm:$0xff]
    %v1237 = vld [vmem:[#allocation2 + $0x168] sm:$0xff]
    %v1238 = vld [vmem:[#allocation2 + $0x170] sm:$0xff]
    %v1239 = vld [vmem:[#allocation2 + $0x178] sm:$0xff]
    %v1240 = vpack.c.bf16 %v1231, %v1230
    %1241 = vmatprep.subr.bf16.mxu0 %v622
    %1242 = vmatpush1.bf16.msra.mxu0 %v621
    %1243 = vmatprep.subr.bf16.mxu0 %v626
    %1244 = vmatpush1.bf16.msra.mxu0 %v625
    %1245 = vmatprep.subr.bf16.mxu0 %v630
    %1246 = vmatpush1.bf16.msra.mxu0 %v629
    %1247 = vmatprep.subr.bf16.mxu0 %v634
    %1248 = vmatpush1.bf16.msra.mxu0 %v633
    %1249 = vmatprep.subr.bf16.mxu0 %v638
    %1250 = vmatpush1.bf16.msra.mxu0 %v637
    %1251 = vmatprep.subr.bf16.mxu0 %v642
    %1252 = vmatpush1.bf16.msra.mxu0 %v641
    %1253 = vmatprep.subr.bf16.mxu0 %v646
    %1254 = vmatpush1.bf16.msra.mxu0 %v645
    %1255 = vmatprep.subr.bf16.mxu0 %v650
    %1256 = vmatpush1.bf16.msra.mxu0 %v649
    %1257 = vmatprep.subr.bf16.mxu0 0
    %1258 = vmatpush1.bf16.msra.mxu0 0
    %1259 = vmatprep.subr.bf16.mxu0 0
    %1260 = vmatpush1.bf16.msra.mxu0 0
    %1261 = vmatprep.subr.bf16.mxu0 0
    %1262 = vmatpush1.bf16.msra.mxu0 0
    %1263 = vmatprep.subr.bf16.mxu0 0
    %1264 = vmatpush1.bf16.msra.mxu0 0
    %1265 = vmatprep.subr.bf16.mxu0 0
    %1266 = vmatpush1.bf16.msra.mxu0 0
    %1267 = vmatprep.subr.bf16.mxu0 0
    %1268 = vmatpush1.bf16.msra.mxu0 0
    %1269 = vmatprep.subr.bf16.mxu0 0
    %1270 = vmatpush1.bf16.msra.mxu0 0
    %1271 = vmatprep.subr.bf16.mxu0 0
    %1272 = vmatpush1.bf16.msra.mxu0 0
    %1273 = vmatprep.mubr.bf16.mxu0 0
    %1274 = vmatmul.mubr.bf16.gmra.mrb[0].mxu0 %v1240
    %v1275 = vpop.f32.mrb[0].mxu0
    %v1276 = vadd.f32 0.0, %v1275
    %v1277 = vpop.f32.mrb[0].mxu0
    %v1278 = vadd.f32 0.0, %v1277
    %v1279 = vpop.f32.mrb[0].mxu0
    %v1280 = vadd.f32 0.0, %v1279
    %v1281 = vpop.f32.mrb[0].mxu0
    %v1282 = vadd.f32 0.0, %v1281
    %1283 = vdwg.mxu0
    %1284 = vmatprep.subr.bf16.mxu0 %v624
    %1285 = vmatpush1.bf16.msra.mxu0 %v623
    %1286 = vmatprep.subr.bf16.mxu0 %v628
    %1287 = vmatpush1.bf16.msra.mxu0 %v627
    %1288 = vmatprep.subr.bf16.mxu0 %v632
    %1289 = vmatpush1.bf16.msra.mxu0 %v631
    %1290 = vmatprep.subr.bf16.mxu0 %v636
    %1291 = vmatpush1.bf16.msra.mxu0 %v635
    %1292 = vmatprep.subr.bf16.mxu0 %v640
    %1293 = vmatpush1.bf16.msra.mxu0 %v639
    %1294 = vmatprep.subr.bf16.mxu0 %v644
    %1295 = vmatpush1.bf16.msra.mxu0 %v643
    %1296 = vmatprep.subr.bf16.mxu0 %v648
    %1297 = vmatpush1.bf16.msra.mxu0 %v647
    %1298 = vmatprep.subr.bf16.mxu0 %v652
    %1299 = vmatpush1.bf16.msra.mxu0 %v651
    %1300 = vmatprep.subr.bf16.mxu0 0
    %1301 = vmatpush1.bf16.msra.mxu0 0
    %1302 = vmatprep.subr.bf16.mxu0 0
    %1303 = vmatpush1.bf16.msra.mxu0 0
    %1304 = vmatprep.subr.bf16.mxu0 0
    %1305 = vmatpush1.bf16.msra.mxu0 0
    %1306 = vmatprep.subr.bf16.mxu0 0
    %1307 = vmatpush1.bf16.msra.mxu0 0
    %1308 = vmatprep.subr.bf16.mxu0 0
    %1309 = vmatpush1.bf16.msra.mxu0 0
    %1310 = vmatprep.subr.bf16.mxu0 0
    %1311 = vmatpush1.bf16.msra.mxu0 0
    %1312 = vmatprep.subr.bf16.mxu0 0
    %1313 = vmatpush1.bf16.msra.mxu0 0
    %1314 = vmatprep.subr.bf16.mxu0 0
    %1315 = vmatpush1.bf16.msra.mxu0 0
    %1316 = vmatprep.mubr.bf16.mxu0 0
    %1317 = vmatmul.mubr.bf16.gmra.mrb[0].mxu0 %v1240
    %v1318 = vpop.f32.mrb[0].mxu0
    %v1319 = vadd.f32 0.0, %v1318
    %v1320 = vpop.f32.mrb[0].mxu0
    %v1321 = vadd.f32 0.0, %v1320
    %v1322 = vpop.f32.mrb[0].mxu0
    %v1323 = vadd.f32 0.0, %v1322
    %v1324 = vpop.f32.mrb[0].mxu0
    %v1325 = vadd.f32 0.0, %v1324
    %1326 = vdwg.mxu0
    %v1327 = vadd.f32 %v1232, %v1276
    %v1328 = vadd.f32 %v1233, %v1278
    %v1329 = vadd.f32 %v1234, %v1319
    %v1330 = vadd.f32 %v1235, %v1321
    %v1331 = vadd.f32 %v1236, %v1280
    %v1332 = vadd.f32 %v1237, %v1282
    %v1333 = vadd.f32 %v1238, %v1323
    %v1334 = vadd.f32 %v1239, %v1325
    %v1335 = vmul.f32 %v1327, 0.5
    %v1336 = vmul.f32 %v1331, 0.5
    %v1337 = vtanh.pop %v1335
    %v1338 = vtanh.pop %v1336
    %v1339 = vadd.f32 %v1337, 1.0
    %v1340 = vadd.f32 %v1338, 1.0
    %v1341 = vmul.f32 %v1339, 0.5
    %v1342 = vmul.f32 %v1340, 0.5
    %v1343 = vmul.f32 %v1328, 0.5
    %v1344 = vmul.f32 %v1332, 0.5
    %v1345 = vtanh.pop %v1343
    %v1346 = vtanh.pop %v1344
    %v1347 = vadd.f32 %v1345, 1.0
    %v1348 = vadd.f32 %v1346, 1.0
    %v1349 = vmul.f32 %v1347, 0.5
    %v1350 = vmul.f32 %v1348, 0.5
    %v1351 = vtanh.pop %v1329
    %v1352 = vtanh.pop %v1333
    %v1353 = vmul.f32 %v1330, 0.5
    %v1354 = vmul.f32 %v1334, 0.5
    %v1355 = vtanh.pop %v1353
    %v1356 = vtanh.pop %v1354
    %v1357 = vadd.f32 %v1355, 1.0
    %v1358 = vadd.f32 %v1356, 1.0
    %v1359 = vmul.f32 %v1357, 0.5
    %v1360 = vmul.f32 %v1358, 0.5
    %v1361 = vmul.f32 %v1349, %v1226
    %v1362 = vmul.f32 %v1350, %v1227
    %v1363 = vmul.f32 %v1341, %v1351
    %v1364 = vmul.f32 %v1342, %v1352
    %v1365 = vadd.f32 %v1361, %v1363
    %v1366 = vadd.f32 %v1362, %v1364
    %v1367 = vtanh.pop %v1365
    %v1368 = vtanh.pop %v1366
    %v1369 = vmul.f32 %v1359, %v1367
    %v1370 = vmul.f32 %v1360, %v1368
    %v1371 = vld [vmem:[#allocation2 + $0x180] sm:$0xff]
    %v1372 = vld [vmem:[#allocation2 + $0x188] sm:$0xff]
    %v1373 = vld [vmem:[#allocation2 + $0x190] sm:$0xff]
    %v1374 = vld [vmem:[#allocation2 + $0x198] sm:$0xff]
    %v1375 = vld [vmem:[#allocation2 + $0x1a0] sm:$0xff]
    %v1376 = vld [vmem:[#allocation2 + $0x1a8] sm:$0xff]
    %v1377 = vld [vmem:[#allocation2 + $0x1b0] sm:$0xff]
    %v1378 = vld [vmem:[#allocation2 + $0x1b8] sm:$0xff]
    %v1379 = vpack.c.bf16 %v1370, %v1369
    %1380 = vmatprep.subr.bf16.mxu0 %v622
    %1381 = vmatpush1.bf16.msra.mxu0 %v621
    %1382 = vmatprep.subr.bf16.mxu0 %v626
    %1383 = vmatpush1.bf16.msra.mxu0 %v625
    %1384 = vmatprep.subr.bf16.mxu0 %v630
    %1385 = vmatpush1.bf16.msra.mxu0 %v629
    %1386 = vmatprep.subr.bf16.mxu0 %v634
    %1387 = vmatpush1.bf16.msra.mxu0 %v633
    %1388 = vmatprep.subr.bf16.mxu0 %v638
    %1389 = vmatpush1.bf16.msra.mxu0 %v637
    %1390 = vmatprep.subr.bf16.mxu0 %v642
    %1391 = vmatpush1.bf16.msra.mxu0 %v641
    %1392 = vmatprep.subr.bf16.mxu0 %v646
    %1393 = vmatpush1.bf16.msra.mxu0 %v645
    %1394 = vmatprep.subr.bf16.mxu0 %v650
    %1395 = vmatpush1.bf16.msra.mxu0 %v649
    %1396 = vmatprep.subr.bf16.mxu0 0
    %1397 = vmatpush1.bf16.msra.mxu0 0
    %1398 = vmatprep.subr.bf16.mxu0 0
    %1399 = vmatpush1.bf16.msra.mxu0 0
    %1400 = vmatprep.subr.bf16.mxu0 0
    %1401 = vmatpush1.bf16.msra.mxu0 0
    %1402 = vmatprep.subr.bf16.mxu0 0
    %1403 = vmatpush1.bf16.msra.mxu0 0
    %1404 = vmatprep.subr.bf16.mxu0 0
    %1405 = vmatpush1.bf16.msra.mxu0 0
    %1406 = vmatprep.subr.bf16.mxu0 0
    %1407 = vmatpush1.bf16.msra.mxu0 0
    %1408 = vmatprep.subr.bf16.mxu0 0
    %1409 = vmatpush1.bf16.msra.mxu0 0
    %1410 = vmatprep.subr.bf16.mxu0 0
    %1411 = vmatpush1.bf16.msra.mxu0 0
    %1412 = vmatprep.mubr.bf16.mxu0 0
    %1413 = vmatmul.mubr.bf16.gmra.mrb[0].mxu0 %v1379
    %v1414 = vpop.f32.mrb[0].mxu0
    %v1415 = vadd.f32 0.0, %v1414
    %v1416 = vpop.f32.mrb[0].mxu0
    %v1417 = vadd.f32 0.0, %v1416
    %v1418 = vpop.f32.mrb[0].mxu0
    %v1419 = vadd.f32 0.0, %v1418
    %v1420 = vpop.f32.mrb[0].mxu0
    %v1421 = vadd.f32 0.0, %v1420
    %1422 = vdwg.mxu0
    %1423 = vmatprep.subr.bf16.mxu0 %v624
    %1424 = vmatpush1.bf16.msra.mxu0 %v623
    %1425 = vmatprep.subr.bf16.mxu0 %v628
    %1426 = vmatpush1.bf16.msra.mxu0 %v627
    %1427 = vmatprep.subr.bf16.mxu0 %v632
    %1428 = vmatpush1.bf16.msra.mxu0 %v631
    %1429 = vmatprep.subr.bf16.mxu0 %v636
    %1430 = vmatpush1.bf16.msra.mxu0 %v635
    %1431 = vmatprep.subr.bf16.mxu0 %v640
    %1432 = vmatpush1.bf16.msra.mxu0 %v639
    %1433 = vmatprep.subr.bf16.mxu0 %v644
    %1434 = vmatpush1.bf16.msra.mxu0 %v643
    %1435 = vmatprep.subr.bf16.mxu0 %v648
    %1436 = vmatpush1.bf16.msra.mxu0 %v647
    %1437 = vmatprep.subr.bf16.mxu0 %v652
    %1438 = vmatpush1.bf16.msra.mxu0 %v651
    %1439 = vmatprep.subr.bf16.mxu0 0
    %1440 = vmatpush1.bf16.msra.mxu0 0
    %1441 = vmatprep.subr.bf16.mxu0 0
    %1442 = vmatpush1.bf16.msra.mxu0 0
    %1443 = vmatprep.subr.bf16.mxu0 0
    %1444 = vmatpush1.bf16.msra.mxu0 0
    %1445 = vmatprep.subr.bf16.mxu0 0
    %1446 = vmatpush1.bf16.msra.mxu0 0
    %1447 = vmatprep.subr.bf16.mxu0 0
    %1448 = vmatpush1.bf16.msra.mxu0 0
    %1449 = vmatprep.subr.bf16.mxu0 0
    %1450 = vmatpush1.bf16.msra.mxu0 0
    %1451 = vmatprep.subr.bf16.mxu0 0
    %1452 = vmatpush1.bf16.msra.mxu0 0
    %1453 = vmatprep.subr.bf16.mxu0 0
    %1454 = vmatpush1.bf16.msra.mxu0 0
    %1455 = vmatprep.mubr.bf16.mxu0 0
    %1456 = vmatmul.mubr.bf16.gmra.mrb[0].mxu0 %v1379
    %v1457 = vpop.f32.mrb[0].mxu0
    %v1458 = vadd.f32 0.0, %v1457
    %v1459 = vpop.f32.mrb[0].mxu0
    %v1460 = vadd.f32 0.0, %v1459
    %v1461 = vpop.f32.mrb[0].mxu0
    %v1462 = vadd.f32 0.0, %v1461
    %v1463 = vpop.f32.mrb[0].mxu0
    %v1464 = vadd.f32 0.0, %v1463
    %1465 = vdwg.mxu0
    %v1466 = vadd.f32 %v1371, %v1415
    %v1467 = vadd.f32 %v1372, %v1417
    %v1468 = vadd.f32 %v1373, %v1458
    %v1469 = vadd.f32 %v1374, %v1460
    %v1470 = vadd.f32 %v1375, %v1419
    %v1471 = vadd.f32 %v1376, %v1421
    %v1472 = vadd.f32 %v1377, %v1462
    %v1473 = vadd.f32 %v1378, %v1464
    %v1474 = vmul.f32 %v1466, 0.5
    %v1475 = vmul.f32 %v1470, 0.5
    %v1476 = vtanh.pop %v1474
    %v1477 = vtanh.pop %v1475
    %v1478 = vadd.f32 %v1476, 1.0
    %v1479 = vadd.f32 %v1477, 1.0
    %v1480 = vmul.f32 %v1478, 0.5
    %v1481 = vmul.f32 %v1479, 0.5
    %v1482 = vmul.f32 %v1467, 0.5
    %v1483 = vmul.f32 %v1471, 0.5
    %v1484 = vtanh.pop %v1482
    %v1485 = vtanh.pop %v1483
    %v1486 = vadd.f32 %v1484, 1.0
    %v1487 = vadd.f32 %v1485, 1.0
    %v1488 = vmul.f32 %v1486, 0.5
    %v1489 = vmul.f32 %v1487, 0.5
    %v1490 = vtanh.pop %v1468
    %v1491 = vtanh.pop %v1472
    %v1492 = vmul.f32 %v1469, 0.5
    %v1493 = vmul.f32 %v1473, 0.5
    %v1494 = vtanh.pop %v1492
    %v1495 = vtanh.pop %v1493
    %v1496 = vadd.f32 %v1494, 1.0
    %v1497 = vadd.f32 %v1495, 1.0
    %v1498 = vmul.f32 %v1496, 0.5
    %v1499 = vmul.f32 %v1497, 0.5
    %v1500 = vmul.f32 %v1488, %v1365
    %v1501 = vmul.f32 %v1489, %v1366
    %v1502 = vmul.f32 %v1480, %v1490
    %v1503 = vmul.f32 %v1481, %v1491
    %v1504 = vadd.f32 %v1500, %v1502
    %v1505 = vadd.f32 %v1501, %v1503
    %v1506 = vtanh.pop %v1504
    %v1507 = vtanh.pop %v1505
    %v1508 = vmul.f32 %v1498, %v1506
    %v1509 = vmul.f32 %v1499, %v1507
    %v1510 = vld [vmem:[#allocation2 + $0x1c0] sm:$0xff]
    %v1511 = vld [vmem:[#allocation2 + $0x1c8] sm:$0xff]
    %v1512 = vld [vmem:[#allocation2 + $0x1d0] sm:$0xff]
    %v1513 = vld [vmem:[#allocation2 + $0x1d8] sm:$0xff]
    %v1514 = vld [vmem:[#allocation2 + $0x1e0] sm:$0xff]
    %v1515 = vld [vmem:[#allocation2 + $0x1e8] sm:$0xff]
    %v1516 = vld [vmem:[#allocation2 + $0x1f0] sm:$0xff]
    %v1517 = vld [vmem:[#allocation2 + $0x1f8] sm:$0xff]
    %v1518 = vpack.c.bf16 %v1509, %v1508
    %1519 = vmatprep.subr.bf16.mxu0 %v622
    %1520 = vmatpush1.bf16.msra.mxu0 %v621
    %1521 = vmatprep.subr.bf16.mxu0 %v626
    %1522 = vmatpush1.bf16.msra.mxu0 %v625
    %1523 = vmatprep.subr.bf16.mxu0 %v630
    %1524 = vmatpush1.bf16.msra.mxu0 %v629
    %1525 = vmatprep.subr.bf16.mxu0 %v634
    %1526 = vmatpush1.bf16.msra.mxu0 %v633
    %1527 = vmatprep.subr.bf16.mxu0 %v638
    %1528 = vmatpush1.bf16.msra.mxu0 %v637
    %1529 = vmatprep.subr.bf16.mxu0 %v642
    %1530 = vmatpush1.bf16.msra.mxu0 %v641
    %1531 = vmatprep.subr.bf16.mxu0 %v646
    %1532 = vmatpush1.bf16.msra.mxu0 %v645
    %1533 = vmatprep.subr.bf16.mxu0 %v650
    %1534 = vmatpush1.bf16.msra.mxu0 %v649
    %1535 = vmatprep.subr.bf16.mxu0 0
    %1536 = vmatpush1.bf16.msra.mxu0 0
    %1537 = vmatprep.subr.bf16.mxu0 0
    %1538 = vmatpush1.bf16.msra.mxu0 0
    %1539 = vmatprep.subr.bf16.mxu0 0
    %1540 = vmatpush1.bf16.msra.mxu0 0
    %1541 = vmatprep.subr.bf16.mxu0 0
    %1542 = vmatpush1.bf16.msra.mxu0 0
    %1543 = vmatprep.subr.bf16.mxu0 0
    %1544 = vmatpush1.bf16.msra.mxu0 0
    %1545 = vmatprep.subr.bf16.mxu0 0
    %1546 = vmatpush1.bf16.msra.mxu0 0
    %1547 = vmatprep.subr.bf16.mxu0 0
    %1548 = vmatpush1.bf16.msra.mxu0 0
    %1549 = vmatprep.subr.bf16.mxu0 0
    %1550 = vmatpush1.bf16.msra.mxu0 0
    %1551 = vmatprep.mubr.bf16.mxu0 0
    %1552 = vmatmul.mubr.bf16.gmra.mrb[0].mxu0 %v1518
    %v1553 = vpop.f32.mrb[0].mxu0
    %v1554 = vadd.f32 0.0, %v1553
    %v1555 = vpop.f32.mrb[0].mxu0
    %v1556 = vadd.f32 0.0, %v1555
    %v1557 = vpop.f32.mrb[0].mxu0
    %v1558 = vadd.f32 0.0, %v1557
    %v1559 = vpop.f32.mrb[0].mxu0
    %v1560 = vadd.f32 0.0, %v1559
    %1561 = vdwg.mxu0
    %1562 = vmatprep.subr.bf16.mxu0 %v624
    %1563 = vmatpush1.bf16.msra.mxu0 %v623
    %1564 = vmatprep.subr.bf16.mxu0 %v628
    %1565 = vmatpush1.bf16.msra.mxu0 %v627
    %1566 = vmatprep.subr.bf16.mxu0 %v632
    %1567 = vmatpush1.bf16.msra.mxu0 %v631
    %1568 = vmatprep.subr.bf16.mxu0 %v636
    %1569 = vmatpush1.bf16.msra.mxu0 %v635
    %1570 = vmatprep.subr.bf16.mxu0 %v640
    %1571 = vmatpush1.bf16.msra.mxu0 %v639
    %1572 = vmatprep.subr.bf16.mxu0 %v644
    %1573 = vmatpush1.bf16.msra.mxu0 %v643
    %1574 = vmatprep.subr.bf16.mxu0 %v648
    %1575 = vmatpush1.bf16.msra.mxu0 %v647
    %1576 = vmatprep.subr.bf16.mxu0 %v652
    %1577 = vmatpush1.bf16.msra.mxu0 %v651
    %1578 = vmatprep.subr.bf16.mxu0 0
    %1579 = vmatpush1.bf16.msra.mxu0 0
    %1580 = vmatprep.subr.bf16.mxu0 0
    %1581 = vmatpush1.bf16.msra.mxu0 0
    %1582 = vmatprep.subr.bf16.mxu0 0
    %1583 = vmatpush1.bf16.msra.mxu0 0
    %1584 = vmatprep.subr.bf16.mxu0 0
    %1585 = vmatpush1.bf16.msra.mxu0 0
    %1586 = vmatprep.subr.bf16.mxu0 0
    %1587 = vmatpush1.bf16.msra.mxu0 0
    %1588 = vmatprep.subr.bf16.mxu0 0
    %1589 = vmatpush1.bf16.msra.mxu0 0
    %1590 = vmatprep.subr.bf16.mxu0 0
    %1591 = vmatpush1.bf16.msra.mxu0 0
    %1592 = vmatprep.subr.bf16.mxu0 0
    %1593 = vmatpush1.bf16.msra.mxu0 0
    %1594 = vmatprep.mubr.bf16.mxu0 0
    %1595 = vmatmul.mubr.bf16.gmra.mrb[0].mxu0 %v1518
    %v1596 = vpop.f32.mrb[0].mxu0
    %v1597 = vadd.f32 0.0, %v1596
    %v1598 = vpop.f32.mrb[0].mxu0
    %v1599 = vadd.f32 0.0, %v1598
    %v1600 = vpop.f32.mrb[0].mxu0
    %v1601 = vadd.f32 0.0, %v1600
    %v1602 = vpop.f32.mrb[0].mxu0
    %v1603 = vadd.f32 0.0, %v1602
    %1604 = vdwg.mxu0
    %v1605 = vadd.f32 %v1510, %v1554
    %v1606 = vadd.f32 %v1511, %v1556
    %v1607 = vadd.f32 %v1512, %v1597
    %v1608 = vadd.f32 %v1513, %v1599
    %v1609 = vadd.f32 %v1514, %v1558
    %v1610 = vadd.f32 %v1515, %v1560
    %v1611 = vadd.f32 %v1516, %v1601
    %v1612 = vadd.f32 %v1517, %v1603
    %v1613 = vmul.f32 %v1605, 0.5
    %v1614 = vmul.f32 %v1609, 0.5
    %v1615 = vtanh.pop %v1613
    %v1616 = vtanh.pop %v1614
    %v1617 = vadd.f32 %v1615, 1.0
    %v1618 = vadd.f32 %v1616, 1.0
    %v1619 = vmul.f32 %v1617, 0.5
    %v1620 = vmul.f32 %v1618, 0.5
    %v1621 = vmul.f32 %v1606, 0.5
    %v1622 = vmul.f32 %v1610, 0.5
    %v1623 = vtanh.pop %v1621
    %v1624 = vtanh.pop %v1622
    %v1625 = vadd.f32 %v1623, 1.0
    %v1626 = vadd.f32 %v1624, 1.0
    %v1627 = vmul.f32 %v1625, 0.5
    %v1628 = vmul.f32 %v1626, 0.5
    %v1629 = vtanh.pop %v1607
    %v1630 = vtanh.pop %v1611
    %v1631 = vmul.f32 %v1608, 0.5
    %v1632 = vmul.f32 %v1612, 0.5
    %v1633 = vtanh.pop %v1631
    %v1634 = vtanh.pop %v1632
    %v1635 = vadd.f32 %v1633, 1.0
    %v1636 = vadd.f32 %v1634, 1.0
    %v1637 = vmul.f32 %v1635, 0.5
    %v1638 = vmul.f32 %v1636, 0.5
    %v1639 = vmul.f32 %v1627, %v1504
    %v1640 = vmul.f32 %v1628, %v1505
    %v1641 = vmul.f32 %v1619, %v1629
    %v1642 = vmul.f32 %v1620, %v1630
    %v1643 = vadd.f32 %v1639, %v1641
    %v1644 = vadd.f32 %v1640, %v1642
    %v1645 = vtanh.pop %v1643
    %v1646 = vtanh.pop %v1644
    %v1647 = vmul.f32 %v1637, %v1645
    %v1648 = vmul.f32 %v1638, %v1646
    %v1649 = vmax.f32 %v1647, 0.0
    %v1650 = vmax.f32 %v1648, 0.0
    %v1651 = vpack.c.bf16 %v1650, %v1649
    %v1652 = vld [vmem:[%s4] sm:$0xf]
    %v1653 = vld [vmem:[%s4 + $0x4] sm:$0xf]
    %v1654 = vld [vmem:[%s4 + $0x8] sm:$0xf]
    %v1655 = vld [vmem:[%s4 + $0xc] sm:$0xf]
    %v1656 = vld [vmem:[%s4 + $0x10] sm:$0xf]
    %v1657 = vld [vmem:[%s4 + $0x14] sm:$0xf]
    %v1658 = vld [vmem:[%s4 + $0x18] sm:$0xf]
    %v1659 = vld [vmem:[%s4 + $0x1c] sm:$0xf]
    %v1660 = vld [vmem:[%s4 + $0x20] sm:$0xf]
    %v1661 = vld [vmem:[%s4 + $0x24] sm:$0xf]
    %v1662 = vld [vmem:[%s4 + $0x28] sm:$0xf]
    %v1663 = vld [vmem:[%s4 + $0x2c] sm:$0xf]
    %v1664 = vld [vmem:[%s4 + $0x30] sm:$0xf]
    %v1665 = vld [vmem:[%s4 + $0x34] sm:$0xf]
    %v1666 = vld [vmem:[%s4 + $0x38] sm:$0xf]
    %v1667 = vld [vmem:[%s4 + $0x3c] sm:$0xf]
    %v1668 = vld [vmem:[%s5] sm:$0x1]
    %v1670 = vlaneseq
    %v1671 = vshrl.u32 %v1670, 7
    %v1672 = vsub.s32 0, %v1671
    %v1673 = vrot.slane %v1668, %v1672
    %v1691 = vunpack.c.l.b16 %v1652
    %v1692 = vunpack.c.l.b16 %v1653
    %v1693 = vunpack.c.l.b16 %v1654
    %v1694 = vunpack.c.l.b16 %v1655
    %v1695 = vunpack.c.l.b16 %v1656
    %v1696 = vunpack.c.l.b16 %v1657
    %v1697 = vunpack.c.l.b16 %v1658
    %v1698 = vunpack.c.l.b16 %v1659
    %v1699 = vunpack.c.l.b16 %v1660
    %v1700 = vunpack.c.l.b16 %v1661
    %v1701 = vunpack.c.l.b16 %v1662
    %v1702 = vunpack.c.l.b16 %v1663
    %v1703 = vunpack.c.l.b16 %v1664
    %v1704 = vunpack.c.l.b16 %v1665
    %v1705 = vunpack.c.l.b16 %v1666
    %v1706 = vunpack.c.l.b16 %v1667
    %v1707 = vpack.c.b16 %v1692, %v1691
    %v1708 = vpack.c.b16 %v1694, %v1693
    %v1709 = vpack.c.b16 %v1696, %v1695
    %v1710 = vpack.c.b16 %v1698, %v1697
    %v1711 = vpack.c.b16 %v1700, %v1699
    %v1712 = vpack.c.b16 %v1702, %v1701
    %v1713 = vpack.c.b16 %v1704, %v1703
    %v1714 = vpack.c.b16 %v1706, %v1705
    %1723 = vmatprep.subr.bf16.mxu0 0
    %1724 = vmatpush1.bf16.msra.mxu0 %v1707
    %1725 = vmatprep.subr.bf16.mxu0 0
    %1726 = vmatpush1.bf16.msra.mxu0 %v1708
    %1727 = vmatprep.subr.bf16.mxu0 0
    %1728 = vmatpush1.bf16.msra.mxu0 %v1709
    %1729 = vmatprep.subr.bf16.mxu0 0
    %1730 = vmatpush1.bf16.msra.mxu0 %v1710
    %1731 = vmatprep.subr.bf16.mxu0 0
    %1732 = vmatpush1.bf16.msra.mxu0 %v1711
    %1733 = vmatprep.subr.bf16.mxu0 0
    %1734 = vmatpush1.bf16.msra.mxu0 %v1712
    %1735 = vmatprep.subr.bf16.mxu0 0
    %1736 = vmatpush1.bf16.msra.mxu0 %v1713
    %1737 = vmatprep.subr.bf16.mxu0 0
    %1738 = vmatpush1.bf16.msra.mxu0 %v1714
    %1739 = vmatprep.subr.bf16.mxu0 0
    %1740 = vmatpush1.bf16.msra.mxu0 0
    %1741 = vmatprep.subr.bf16.mxu0 0
    %1742 = vmatpush1.bf16.msra.mxu0 0
    %1743 = vmatprep.subr.bf16.mxu0 0
    %1744 = vmatpush1.bf16.msra.mxu0 0
    %1745 = vmatprep.subr.bf16.mxu0 0
    %1746 = vmatpush1.bf16.msra.mxu0 0
    %1747 = vmatprep.subr.bf16.mxu0 0
    %1748 = vmatpush1.bf16.msra.mxu0 0
    %1749 = vmatprep.subr.bf16.mxu0 0
    %1750 = vmatpush1.bf16.msra.mxu0 0
    %1751 = vmatprep.subr.bf16.mxu0 0
    %1752 = vmatpush1.bf16.msra.mxu0 0
    %1753 = vmatprep.subr.bf16.mxu0 0
    %1754 = vmatpush1.bf16.msra.mxu0 0
    %1755 = vmatprep.mubr.bf16.mxu0 0
    %1756 = vmatmul.mubr.bf16.gmra.mrb[0].mxu0 %v1651
    %v1757 = vpop.f32.mrb[0].mxu0
    %v1758 = vadd.f32 %v1673, %v1757
    %v1759 = vpop.f32.mrb[0].mxu0
    %v1760 = vpop.f32.mrb[0].mxu0
    %v1761 = vadd.f32 %v1673, %v1760
    %v1762 = vpop.f32.mrb[0].mxu0
    %1763 = vdwg.mxu0
    %vm1764 = vcmask 31744
    %1765 = vst.msk [vmem:[%s6] sm:$0xff] %vm1764, %v1758
    %1766 = vst.msk [vmem:[%s6 + $0x8] sm:$0xff] %vm1764, %v1761
    // Predicated region
    $region30: #{lstm_forward.1} parent=1 // pred_check
      _
    $region31: #{lstm_forward.1} parent=1 // pred_check_branch
      %1768 = sbr.rel (0) target = $region33
    $region32: #{lstm_forward.1} parent=1 // pred_region
      _
    $region33: #{lstm_forward.1} parent=1 // pred_fallthru
      _
    // Predicated region
    $region34: #{lstm_forward.1} parent=1 // pred_check
      _
    $region35: #{lstm_forward.1} parent=1 // pred_check_branch
      %1770 = sbr.rel (0) target = $region37
    $region36: #{lstm_forward.1} parent=1 // pred_region
      _
    $region37: #{lstm_forward.1} parent=1 // pred_fallthru
      _
    %1771 = vsyncpa [#allocation4], 1

</llo_original>
